<compile_context>
chip_gen: v6e
topology: v6e:2x2x1
jax: 0.10.0
libtpu: 0.0.40
codegen_flags: <defaults>
</compile_context>

<pallas_src>
import jax
import jax.numpy as jnp
from jax.experimental import pallas as pl
from jax.experimental.pallas import tpu as pltpu

# ---- small, forward-consistent dims ----
VOCAB_SIZE = 48       # vocab_size
HIDDEN     = 32       # hidden_state
WORD_EMB   = 32       # word_embedding_size
EMB        = 32       # embedding_size
IMG_FEAT   = 1024     # GoogLeNet 'avgpool' feature dim (fixed by nn.Linear(1024, E))
BATCH      = 2
SEQ        = 8
IMG_C, IMG_H, IMG_W = 3, 16, 16

F32 = jnp.float32
_VMEM = pl.BlockSpec(memory_space=pltpu.MemorySpace.VMEM)   # whole-array VMEM block


# ---------------------------------------------------------------------------
# Fused kernel: image -> (h0,c0), embedding lookup, LSTM recurrence, final proj
# ---------------------------------------------------------------------------
def _captioner_kernel(tok_ref, x_ref, emb_ref,
                      wh_ref, bh_ref, wc_ref, bc_ref,
                      wih_ref, whh_ref, bias_ref,
                      wout_ref, bout_ref,
                      out_ref, hs_ref):
    # layout:
    #   tok_ref : (T*B, 1) int32, time-major flattened tokens
    #   x_ref   : (B, C, H*W) lane-dense image
    #   out_ref : (T*B, V) time-major flattened logits
    #   hs_ref  : (T*B, H) VMEM scratch collecting hidden states
    B = x_ref.shape[0]
    TB = tok_ref.shape[0]
    T = TB // B
    Hd = wh_ref.shape[1]
    V = emb_ref.shape[0]

    # ---- image -> (h0, c0) -------------------------------------------------
    # TODO(synk): pretrained GoogLeNet backbone has no in-script equivalent;
    # stand-in = global average pool over (H, W) + deterministic linear C->1024
    # (folded with justify/init linears in the wrapper since the chain is linear).
    pooled = jnp.mean(x_ref[...], axis=-1)                                          # (B, C)
    h = jnp.dot(pooled, wh_ref[...], preferred_element_type=F32) + bh_ref[...]      # (B, H)
    c = jnp.dot(pooled, wc_ref[...], preferred_element_type=F32) + bc_ref[...]      # (B, H)

    # ---- nn.Embedding fused as a one-hot matmul ----------------------------
    tok = tok_ref[...]                                                              # (T*B, 1)
    iota = jax.lax.broadcasted_iota(jnp.int32, (TB, V), 1)
    onehot = jnp.where(tok == iota, 1.0, 0.0).astype(F32)                           # (T*B, V)
    xe = jnp.dot(onehot, emb_ref[...], preferred_element_type=F32)                  # (T*B, We)

    # ---- hoisted input projection with pre-summed LSTM biases --------------
    xg = jnp.dot(xe, wih_ref[...], preferred_element_type=F32) + bias_ref[...]      # (T*B, 4H)

    # ---- recurrence: only h @ W_hh remains on the sequential path ----------
    whh = whh_ref[...]
    for t in range(T):  # static unroll (T is small & static)
        gates = xg[t * B:(t + 1) * B, :] + jnp.dot(h, whh, preferred_element_type=F32)
        # PyTorch LSTM gate order: input, forget, cell, output
        i = jax.nn.sigmoid(gates[:, 0 * Hd:1 * Hd])
        f = jax.nn.sigmoid(gates[:, 1 * Hd:2 * Hd])
        g = jnp.tanh(gates[:, 2 * Hd:3 * Hd])
        o = jax.nn.sigmoid(gates[:, 3 * Hd:4 * Hd])
        c = f * c + i * g
        h = o * jnp.tanh(c)
        hs_ref[pl.ds(t * B, B), :] = h

    # ---- single batched output projection + one slab store -----------------
    out_ref[...] = (jnp.dot(hs_ref[...], wout_ref[...], preferred_element_type=F32)
                    + bout_ref[...])


# ---------------------------------------------------------------------------
# Parameters (deterministic, in-script)
# ---------------------------------------------------------------------------
def init_params(key):
    ks = jax.random.split(key, 12)
    s = 0.02
    p = {}
    p['embedding'] = jax.random.normal(ks[0], (VOCAB_SIZE, WORD_EMB), F32) * s
    # stand-in backbone projection C -> 1024 (see TODO in kernel)
    p['backbone_w'] = jax.random.normal(ks[1], (IMG_C, IMG_FEAT), F32) * s
    p['backbone_b'] = jnp.zeros((1, IMG_FEAT), F32)
    p['justify_w'] = jax.random.normal(ks[2], (IMG_FEAT, EMB), F32) * s
    p['justify_b'] = jax.random.normal(ks[3], (1, EMB), F32) * s
    p['init_h_w'] = jax.random.normal(ks[4], (EMB, HIDDEN), F32) * s
    p['init_h_b'] = jax.random.normal(ks[5], (1, HIDDEN), F32) * s
    p['init_c_w'] = jax.random.normal(ks[6], (EMB, HIDDEN), F32) * s
    p['init_c_b'] = jax.random.normal(ks[7], (1, HIDDEN), F32) * s
    # LSTM weights stored pre-transposed: gates = x @ w_ih + h @ w_hh  (order i,f,g,o)
    p['w_ih'] = jax.random.normal(ks[8], (WORD_EMB, 4 * HIDDEN), F32) * s
    p['w_hh'] = jax.random.normal(ks[9], (HIDDEN, 4 * HIDDEN), F32) * s
    p['b_ih'] = jnp.zeros((1, 4 * HIDDEN), F32)
    p['b_hh'] = jnp.zeros((1, 4 * HIDDEN), F32)
    p['final_w'] = jax.random.normal(ks[10], (HIDDEN, VOCAB_SIZE), F32) * s
    p['final_b'] = jax.random.normal(ks[11], (1, VOCAB_SIZE), F32) * s
    return p


# ---------------------------------------------------------------------------
# Wrapper = Captioner.forward  (one pallas_call, tiny fold/transpose glue)
# ---------------------------------------------------------------------------
def captioner_forward(params, X, token_sequences):
    B, T = token_sequences.shape
    C = X.shape[1]
    HW = X.shape[2] * X.shape[3]

    # lane-dense image: (B, C, H*W) so the pooling reduce is over the lane axis
    x_flat = X.reshape(B, C, HW)

    # Fold the purely-linear image chain (backbone -> justify -> init_h/init_c)
    # into two tiny (C, H) weights; exact up to fp rounding.
    wj = params['backbone_w'] @ params['justify_w']                       # (C, E)
    bj = params['backbone_b'] @ params['justify_w'] + params['justify_b'] # (1, E)
    wh = wj @ params['init_h_w']                                          # (C, H)
    bh = bj @ params['init_h_w'] + params['init_h_b']                     # (1, H)
    wc = wj @ params['init_c_w']                                          # (C, H)
    bc = bj @ params['init_c_w'] + params['init_c_b']                     # (1, H)
    bias = params['b_ih'] + params['b_hh']                                # (1, 4H)

    # time-major flattened tokens: row t*B + b == token_sequences[b, t]
    tok_tm = jnp.transpose(token_sequences).reshape(T * B, 1).astype(jnp.int32)

    logits_tm = pl.pallas_call(
        _captioner_kernel,
        out_shape=jax.ShapeDtypeStruct((T * B, VOCAB_SIZE), F32),
        in_specs=[_VMEM] * 12,
        out_specs=_VMEM,
        scratch_shapes=[pltpu.VMEM((T * B, HIDDEN), F32)],
    )(tok_tm, x_flat, params['embedding'],
      wh, bh, wc, bc,
      params['w_ih'], params['w_hh'], bias,
      params['final_w'], params['final_b'])

    return logits_tm.reshape(T, B, VOCAB_SIZE).transpose(1, 0, 2)         # (B, T, V)


# ---------------------------------------------------------------------------
# Pure-JAX reference (unfolded chain, step-by-step LSTM) for verification
# ---------------------------------------------------------------------------
def reference_forward(params, X, token_sequences):
    pooled = jnp.mean(X, axis=(2, 3))
    feats = pooled @ params['backbone_w'] + params['backbone_b']
    lin = feats @ params['justify_w'] + params['justify_b']
    h = lin @ params['init_h_w'] + params['init_h_b']
    c = lin @ params['init_c_w'] + params['init_c_b']
    tok_emb = jnp.take(params['embedding'], token_sequences, axis=0)
    Hd = HIDDEN
    outs = []
    for t in range(token_sequences.shape[1]):
        x_t = tok_emb[:, t, :]
        gates = (x_t @ params['w_ih'] + params['b_ih']
                 + h @ params['w_hh'] + params['b_hh'])
        i = jax.nn.sigmoid(gates[:, :Hd])
        f = jax.nn.sigmoid(gates[:, Hd:2 * Hd])
        g = jnp.tanh(gates[:, 2 * Hd:3 * Hd])
        o = jax.nn.sigmoid(gates[:, 3 * Hd:4 * Hd])
        c = f * c + i * g
        h = o * jnp.tanh(c)
        outs.append(h @ params['final_w'] + params['final_b'])
    return jnp.stack(outs, axis=1)


if __name__ == "__main__":
    key = jax.random.PRNGKey(0)
    pkey, xkey, tkey = jax.random.split(key, 3)

    params = init_params(pkey)
    X = jax.random.normal(xkey, (BATCH, IMG_C, IMG_H, IMG_W), F32)          # NCHW, like PyTorch
    tokens = jax.random.randint(tkey, (BATCH, SEQ), 0, VOCAB_SIZE, dtype=jnp.int32)

    logits = jax.jit(captioner_forward)(params, X, tokens)
    logits = jax.block_until_ready(logits)

    ref = reference_forward(params, X, tokens)
    assert logits.shape == (BATCH, SEQ, VOCAB_SIZE), logits.shape
    assert jnp.allclose(logits, ref, atol=1e-4, rtol=1e-4), "mismatch vs reference"

    print("KERNEL_OK")
</pallas_src>

<mosaic_0001>
module attributes {stable_mosaic.version = 11 : i64} {
  func.func @_captioner_kernel(%arg0: memref<16x1xi32, #tpu.memory_space<vmem>>, %arg1: memref<2x3x256xf32, #tpu.memory_space<vmem>>, %arg2: memref<48x32xf32, #tpu.memory_space<vmem>>, %arg3: memref<3x32xf32, #tpu.memory_space<vmem>>, %arg4: memref<1x32xf32, #tpu.memory_space<vmem>>, %arg5: memref<3x32xf32, #tpu.memory_space<vmem>>, %arg6: memref<1x32xf32, #tpu.memory_space<vmem>>, %arg7: memref<32x128xf32, #tpu.memory_space<vmem>>, %arg8: memref<32x128xf32, #tpu.memory_space<vmem>>, %arg9: memref<1x128xf32, #tpu.memory_space<vmem>>, %arg10: memref<32x48xf32, #tpu.memory_space<vmem>>, %arg11: memref<1x48xf32, #tpu.memory_space<vmem>>, %arg12: memref<16x48xf32, #tpu.memory_space<vmem>>, %arg13: memref<16x32xf32, #tpu.memory_space<vmem>>) attributes {dimension_semantics = [], scalar_prefetch = 0 : i64, scratch_operands = 1 : i64, tpu.core_type = #tpu.core_type<tc>} {
    %c0 = arith.constant 0 : index
    %c0_0 = arith.constant 0 : index
    %c0_1 = arith.constant 0 : index
    %0 = vector.load %arg1[%c0, %c0_0, %c0_1] : memref<2x3x256xf32, #tpu.memory_space<vmem>>, vector<2x3x256xf32>
    %cst = arith.constant dense<0.000000e+00> : vector<2x3xf32>
    %1 = vector.multi_reduction <add>, %0, %cst [2] : vector<2x3x256xf32> to vector<2x3xf32>
    %cst_2 = arith.constant 2.560000e+02 : f32
    %2 = vector.broadcast %cst_2 : f32 to vector<2x3xf32>
    %3 = arith.divf %1, %2 : vector<2x3xf32>
    %c0_3 = arith.constant 0 : index
    %c0_4 = arith.constant 0 : index
    %4 = vector.load %arg3[%c0_3, %c0_4] : memref<3x32xf32, #tpu.memory_space<vmem>>, vector<3x32xf32>
    %cst_5 = arith.constant dense<0.000000e+00> : vector<2x32xf32>
    %5 = tpu.matmul %3, %4, %cst_5 {dimension_numbers = #tpu.dot_dimension_numbers<[1], [0], [0], [1], [0, 0, 1, 1], [], []>} : vector<2x3xf32>, vector<3x32xf32>, vector<2x32xf32> -> vector<2x32xf32>
    %c0_6 = arith.constant 0 : index
    %c0_7 = arith.constant 0 : index
    %6 = vector.load %arg4[%c0_6, %c0_7] : memref<1x32xf32, #tpu.memory_space<vmem>>, vector<1x32xf32>
    %7 = vector.broadcast %6 : vector<1x32xf32> to vector<2x32xf32>
    %8 = arith.addf %5, %7 : vector<2x32xf32>
    %c0_8 = arith.constant 0 : index
    %c0_9 = arith.constant 0 : index
    %9 = vector.load %arg5[%c0_8, %c0_9] : memref<3x32xf32, #tpu.memory_space<vmem>>, vector<3x32xf32>
    %cst_10 = arith.constant dense<0.000000e+00> : vector<2x32xf32>
    %10 = tpu.matmul %3, %9, %cst_10 {dimension_numbers = #tpu.dot_dimension_numbers<[1], [0], [0], [1], [0, 0, 1, 1], [], []>} : vector<2x3xf32>, vector<3x32xf32>, vector<2x32xf32> -> vector<2x32xf32>
    %c0_11 = arith.constant 0 : index
    %c0_12 = arith.constant 0 : index
    %11 = vector.load %arg6[%c0_11, %c0_12] : memref<1x32xf32, #tpu.memory_space<vmem>>, vector<1x32xf32>
    %12 = vector.broadcast %11 : vector<1x32xf32> to vector<2x32xf32>
    %13 = arith.addf %10, %12 : vector<2x32xf32>
    %c0_13 = arith.constant 0 : index
    %c0_14 = arith.constant 0 : index
    %14 = vector.load %arg0[%c0_13, %c0_14] : memref<16x1xi32, #tpu.memory_space<vmem>>, vector<16x1xi32>
    %15 = tpu.iota {dimensions = array<i32: 1>} : vector<16x48xi32>
    %16 = vector.broadcast %14 : vector<16x1xi32> to vector<16x48xi32>
    %17 = arith.cmpi eq, %16, %15 : vector<16x48xi32>
    %cst_15 = arith.constant 1.000000e+00 : f32
    %cst_16 = arith.constant 0.000000e+00 : f32
    %18 = vector.broadcast %cst_15 : f32 to vector<16x48xf32>
    %19 = vector.broadcast %cst_16 : f32 to vector<16x48xf32>
    %20 = arith.select %17, %18, %19 : vector<16x48xi1>, vector<16x48xf32>
    %c0_17 = arith.constant 0 : index
    %c0_18 = arith.constant 0 : index
    %21 = vector.load %arg2[%c0_17, %c0_18] : memref<48x32xf32, #tpu.memory_space<vmem>>, vector<48x32xf32>
    %cst_19 = arith.constant dense<0.000000e+00> : vector<16x32xf32>
    %22 = tpu.matmul %20, %21, %cst_19 {dimension_numbers = #tpu.dot_dimension_numbers<[1], [0], [0], [1], [0, 0, 1, 1], [], []>} : vector<16x48xf32>, vector<48x32xf32>, vector<16x32xf32> -> vector<16x32xf32>
    %c0_20 = arith.constant 0 : index
    %c0_21 = arith.constant 0 : index
    %23 = vector.load %arg7[%c0_20, %c0_21] : memref<32x128xf32, #tpu.memory_space<vmem>>, vector<32x128xf32>
    %cst_22 = arith.constant dense<0.000000e+00> : vector<16x128xf32>
    %24 = tpu.matmul %22, %23, %cst_22 {dimension_numbers = #tpu.dot_dimension_numbers<[1], [0], [0], [1], [0, 0, 1, 1], [], []>} : vector<16x32xf32>, vector<32x128xf32>, vector<16x128xf32> -> vector<16x128xf32>
    %c0_23 = arith.constant 0 : index
    %c0_24 = arith.constant 0 : index
    %25 = vector.load %arg9[%c0_23, %c0_24] : memref<1x128xf32, #tpu.memory_space<vmem>>, vector<1x128xf32>
    %26 = vector.broadcast %25 : vector<1x128xf32> to vector<16x128xf32>
    %27 = arith.addf %24, %26 : vector<16x128xf32>
    %c0_25 = arith.constant 0 : index
    %c0_26 = arith.constant 0 : index
    %28 = vector.load %arg8[%c0_25, %c0_26] : memref<32x128xf32, #tpu.memory_space<vmem>>, vector<32x128xf32>
    %29 = vector.extract_strided_slice %27 {offsets = [0, 0], sizes = [2, 128], strides = [1, 1]} : vector<16x128xf32> to vector<2x128xf32>
    %cst_27 = arith.constant dense<0.000000e+00> : vector<2x128xf32>
    %30 = tpu.matmul %8, %28, %cst_27 {dimension_numbers = #tpu.dot_dimension_numbers<[1], [0], [0], [1], [0, 0, 1, 1], [], []>} : vector<2x32xf32>, vector<32x128xf32>, vector<2x128xf32> -> vector<2x128xf32>
    %31 = arith.addf %29, %30 : vector<2x128xf32>
    %32 = vector.extract_strided_slice %31 {offsets = [0, 0], sizes = [2, 32], strides = [1, 1]} : vector<2x128xf32> to vector<2x32xf32>
    %33 = arith.negf %32 : vector<2x32xf32>
    %34 = math.exp %33 : vector<2x32xf32>
    %cst_28 = arith.constant 1.000000e+00 : f32
    %35 = vector.broadcast %cst_28 : f32 to vector<2x32xf32>
    %36 = arith.addf %35, %34 : vector<2x32xf32>
    %37 = arith.divf %35, %36 : vector<2x32xf32>
    %38 = vector.extract_strided_slice %31 {offsets = [0, 32], sizes = [2, 32], strides = [1, 1]} : vector<2x128xf32> to vector<2x32xf32>
    %39 = arith.negf %38 : vector<2x32xf32>
    %40 = math.exp %39 : vector<2x32xf32>
    %cst_29 = arith.constant 1.000000e+00 : f32
    %41 = vector.broadcast %cst_29 : f32 to vector<2x32xf32>
    %42 = arith.addf %41, %40 : vector<2x32xf32>
    %43 = arith.divf %41, %42 : vector<2x32xf32>
    %44 = vector.extract_strided_slice %31 {offsets = [0, 64], sizes = [2, 32], strides = [1, 1]} : vector<2x128xf32> to vector<2x32xf32>
    %45 = math.tanh %44 : vector<2x32xf32>
    %46 = vector.extract_strided_slice %31 {offsets = [0, 96], sizes = [2, 32], strides = [1, 1]} : vector<2x128xf32> to vector<2x32xf32>
    %47 = arith.negf %46 : vector<2x32xf32>
    %48 = math.exp %47 : vector<2x32xf32>
    %cst_30 = arith.constant 1.000000e+00 : f32
    %49 = vector.broadcast %cst_30 : f32 to vector<2x32xf32>
    %50 = arith.addf %49, %48 : vector<2x32xf32>
    %51 = arith.divf %49, %50 : vector<2x32xf32>
    %52 = arith.mulf %43, %13 : vector<2x32xf32>
    %53 = arith.mulf %37, %45 : vector<2x32xf32>
    %54 = arith.addf %52, %53 : vector<2x32xf32>
    %55 = math.tanh %54 : vector<2x32xf32>
    %56 = arith.mulf %51, %55 : vector<2x32xf32>
    %c0_31 = arith.constant 0 : index
    %c0_32 = arith.constant 0 : index
    %57 = vector.load %arg13[%c0_31, %c0_32] : memref<16x32xf32, #tpu.memory_space<vmem>>, vector<2x32xf32>
    tpu.vector_store %arg13[%c0_31, %c0_32], %56 {strides = array<i32>} : memref<16x32xf32, #tpu.memory_space<vmem>>, vector<2x32xf32>,
    %58 = vector.extract_strided_slice %27 {offsets = [2, 0], sizes = [2, 128], strides = [1, 1]} : vector<16x128xf32> to vector<2x128xf32>
    %cst_33 = arith.constant dense<0.000000e+00> : vector<2x128xf32>
    %59 = tpu.matmul %56, %28, %cst_33 {dimension_numbers = #tpu.dot_dimension_numbers<[1], [0], [0], [1], [0, 0, 1, 1], [], []>} : vector<2x32xf32>, vector<32x128xf32>, vector<2x128xf32> -> vector<2x128xf32>
    %60 = arith.addf %58, %59 : vector<2x128xf32>
    %61 = vector.extract_strided_slice %60 {offsets = [0, 0], sizes = [2, 32], strides = [1, 1]} : vector<2x128xf32> to vector<2x32xf32>
    %62 = arith.negf %61 : vector<2x32xf32>
    %63 = math.exp %62 : vector<2x32xf32>
    %cst_34 = arith.constant 1.000000e+00 : f32
    %64 = vector.broadcast %cst_34 : f32 to vector<2x32xf32>
    %65 = arith.addf %64, %63 : vector<2x32xf32>
    %66 = arith.divf %64, %65 : vector<2x32xf32>
    %67 = vector.extract_strided_slice %60 {offsets = [0, 32], sizes = [2, 32], strides = [1, 1]} : vector<2x128xf32> to vector<2x32xf32>
    %68 = arith.negf %67 : vector<2x32xf32>
    %69 = math.exp %68 : vector<2x32xf32>
    %cst_35 = arith.constant 1.000000e+00 : f32
    %70 = vector.broadcast %cst_35 : f32 to vector<2x32xf32>
    %71 = arith.addf %70, %69 : vector<2x32xf32>
    %72 = arith.divf %70, %71 : vector<2x32xf32>
    %73 = vector.extract_strided_slice %60 {offsets = [0, 64], sizes = [2, 32], strides = [1, 1]} : vector<2x128xf32> to vector<2x32xf32>
    %74 = math.tanh %73 : vector<2x32xf32>
    %75 = vector.extract_strided_slice %60 {offsets = [0, 96], sizes = [2, 32], strides = [1, 1]} : vector<2x128xf32> to vector<2x32xf32>
    %76 = arith.negf %75 : vector<2x32xf32>
    %77 = math.exp %76 : vector<2x32xf32>
    %cst_36 = arith.constant 1.000000e+00 : f32
    %78 = vector.broadcast %cst_36 : f32 to vector<2x32xf32>
    %79 = arith.addf %78, %77 : vector<2x32xf32>
    %80 = arith.divf %78, %79 : vector<2x32xf32>
    %81 = arith.mulf %72, %54 : vector<2x32xf32>
    %82 = arith.mulf %66, %74 : vector<2x32xf32>
    %83 = arith.addf %81, %82 : vector<2x32xf32>
    %84 = math.tanh %83 : vector<2x32xf32>
    %85 = arith.mulf %80, %84 : vector<2x32xf32>
    %c2 = arith.constant 2 : index
    %c0_37 = arith.constant 0 : index
    %86 = vector.load %arg13[%c2, %c0_37] : memref<16x32xf32, #tpu.memory_space<vmem>>, vector<2x32xf32>
    tpu.vector_store %arg13[%c2, %c0_37], %85 {strides = array<i32>} : memref<16x32xf32, #tpu.memory_space<vmem>>, vector<2x32xf32>,
    %87 = vector.extract_strided_slice %27 {offsets = [4, 0], sizes = [2, 128], strides = [1, 1]} : vector<16x128xf32> to vector<2x128xf32>
    %cst_38 = arith.constant dense<0.000000e+00> : vector<2x128xf32>
    %88 = tpu.matmul %85, %28, %cst_38 {dimension_numbers = #tpu.dot_dimension_numbers<[1], [0], [0], [1], [0, 0, 1, 1], [], []>} : vector<2x32xf32>, vector<32x128xf32>, vector<2x128xf32> -> vector<2x128xf32>
    %89 = arith.addf %87, %88 : vector<2x128xf32>
    %90 = vector.extract_strided_slice %89 {offsets = [0, 0], sizes = [2, 32], strides = [1, 1]} : vector<2x128xf32> to vector<2x32xf32>
    %91 = arith.negf %90 : vector<2x32xf32>
    %92 = math.exp %91 : vector<2x32xf32>
    %cst_39 = arith.constant 1.000000e+00 : f32
    %93 = vector.broadcast %cst_39 : f32 to vector<2x32xf32>
    %94 = arith.addf %93, %92 : vector<2x32xf32>
    %95 = arith.divf %93, %94 : vector<2x32xf32>
    %96 = vector.extract_strided_slice %89 {offsets = [0, 32], sizes = [2, 32], strides = [1, 1]} : vector<2x128xf32> to vector<2x32xf32>
    %97 = arith.negf %96 : vector<2x32xf32>
    %98 = math.exp %97 : vector<2x32xf32>
    %cst_40 = arith.constant 1.000000e+00 : f32
    %99 = vector.broadcast %cst_40 : f32 to vector<2x32xf32>
    %100 = arith.addf %99, %98 : vector<2x32xf32>
    %101 = arith.divf %99, %100 : vector<2x32xf32>
    %102 = vector.extract_strided_slice %89 {offsets = [0, 64], sizes = [2, 32], strides = [1, 1]} : vector<2x128xf32> to vector<2x32xf32>
    %103 = math.tanh %102 : vector<2x32xf32>
    %104 = vector.extract_strided_slice %89 {offsets = [0, 96], sizes = [2, 32], strides = [1, 1]} : vector<2x128xf32> to vector<2x32xf32>
    %105 = arith.negf %104 : vector<2x32xf32>
    %106 = math.exp %105 : vector<2x32xf32>
    %cst_41 = arith.constant 1.000000e+00 : f32
    %107 = vector.broadcast %cst_41 : f32 to vector<2x32xf32>
    %108 = arith.addf %107, %106 : vector<2x32xf32>
    %109 = arith.divf %107, %108 : vector<2x32xf32>
    %110 = arith.mulf %101, %83 : vector<2x32xf32>
    %111 = arith.mulf %95, %103 : vector<2x32xf32>
    %112 = arith.addf %110, %111 : vector<2x32xf32>
    %113 = math.tanh %112 : vector<2x32xf32>
    %114 = arith.mulf %109, %113 : vector<2x32xf32>
    %c4 = arith.constant 4 : index
    %c0_42 = arith.constant 0 : index
    %115 = vector.load %arg13[%c4, %c0_42] : memref<16x32xf32, #tpu.memory_space<vmem>>, vector<2x32xf32>
    tpu.vector_store %arg13[%c4, %c0_42], %114 {strides = array<i32>} : memref<16x32xf32, #tpu.memory_space<vmem>>, vector<2x32xf32>,
    %116 = vector.extract_strided_slice %27 {offsets = [6, 0], sizes = [2, 128], strides = [1, 1]} : vector<16x128xf32> to vector<2x128xf32>
    %cst_43 = arith.constant dense<0.000000e+00> : vector<2x128xf32>
    %117 = tpu.matmul %114, %28, %cst_43 {dimension_numbers = #tpu.dot_dimension_numbers<[1], [0], [0], [1], [0, 0, 1, 1], [], []>} : vector<2x32xf32>, vector<32x128xf32>, vector<2x128xf32> -> vector<2x128xf32>
    %118 = arith.addf %116, %117 : vector<2x128xf32>
    %119 = vector.extract_strided_slice %118 {offsets = [0, 0], sizes = [2, 32], strides = [1, 1]} : vector<2x128xf32> to vector<2x32xf32>
    %120 = arith.negf %119 : vector<2x32xf32>
    %121 = math.exp %120 : vector<2x32xf32>
    %cst_44 = arith.constant 1.000000e+00 : f32
    %122 = vector.broadcast %cst_44 : f32 to vector<2x32xf32>
    %123 = arith.addf %122, %121 : vector<2x32xf32>
    %124 = arith.divf %122, %123 : vector<2x32xf32>
    %125 = vector.extract_strided_slice %118 {offsets = [0, 32], sizes = [2, 32], strides = [1, 1]} : vector<2x128xf32> to vector<2x32xf32>
    %126 = arith.negf %125 : vector<2x32xf32>
    %127 = math.exp %126 : vector<2x32xf32>
    %cst_45 = arith.constant 1.000000e+00 : f32
    %128 = vector.broadcast %cst_45 : f32 to vector<2x32xf32>
    %129 = arith.addf %128, %127 : vector<2x32xf32>
    %130 = arith.divf %128, %129 : vector<2x32xf32>
    %131 = vector.extract_strided_slice %118 {offsets = [0, 64], sizes = [2, 32], strides = [1, 1]} : vector<2x128xf32> to vector<2x32xf32>
    %132 = math.tanh %131 : vector<2x32xf32>
    %133 = vector.extract_strided_slice %118 {offsets = [0, 96], sizes = [2, 32], strides = [1, 1]} : vector<2x128xf32> to vector<2x32xf32>
    %134 = arith.negf %133 : vector<2x32xf32>
    %135 = math.exp %134 : vector<2x32xf32>
    %cst_46 = arith.constant 1.000000e+00 : f32
    %136 = vector.broadcast %cst_46 : f32 to vector<2x32xf32>
    %137 = arith.addf %136, %135 : vector<2x32xf32>
    %138 = arith.divf %136, %137 : vector<2x32xf32>
    %139 = arith.mulf %130, %112 : vector<2x32xf32>
    %140 = arith.mulf %124, %132 : vector<2x32xf32>
    %141 = arith.addf %139, %140 : vector<2x32xf32>
    %142 = math.tanh %141 : vector<2x32xf32>
    %143 = arith.mulf %138, %142 : vector<2x32xf32>
    %c6 = arith.constant 6 : index
    %c0_47 = arith.constant 0 : index
    %144 = vector.load %arg13[%c6, %c0_47] : memref<16x32xf32, #tpu.memory_space<vmem>>, vector<2x32xf32>
    tpu.vector_store %arg13[%c6, %c0_47], %143 {strides = array<i32>} : memref<16x32xf32, #tpu.memory_space<vmem>>, vector<2x32xf32>,
    %145 = vector.extract_strided_slice %27 {offsets = [8, 0], sizes = [2, 128], strides = [1, 1]} : vector<16x128xf32> to vector<2x128xf32>
    %cst_48 = arith.constant dense<0.000000e+00> : vector<2x128xf32>
    %146 = tpu.matmul %143, %28, %cst_48 {dimension_numbers = #tpu.dot_dimension_numbers<[1], [0], [0], [1], [0, 0, 1, 1], [], []>} : vector<2x32xf32>, vector<32x128xf32>, vector<2x128xf32> -> vector<2x128xf32>
    %147 = arith.addf %145, %146 : vector<2x128xf32>
    %148 = vector.extract_strided_slice %147 {offsets = [0, 0], sizes = [2, 32], strides = [1, 1]} : vector<2x128xf32> to vector<2x32xf32>
    %149 = arith.negf %148 : vector<2x32xf32>
    %150 = math.exp %149 : vector<2x32xf32>
    %cst_49 = arith.constant 1.000000e+00 : f32
    %151 = vector.broadcast %cst_49 : f32 to vector<2x32xf32>
    %152 = arith.addf %151, %150 : vector<2x32xf32>
    %153 = arith.divf %151, %152 : vector<2x32xf32>
    %154 = vector.extract_strided_slice %147 {offsets = [0, 32], sizes = [2, 32], strides = [1, 1]} : vector<2x128xf32> to vector<2x32xf32>
    %155 = arith.negf %154 : vector<2x32xf32>
    %156 = math.exp %155 : vector<2x32xf32>
    %cst_50 = arith.constant 1.000000e+00 : f32
    %157 = vector.broadcast %cst_50 : f32 to vector<2x32xf32>
    %158 = arith.addf %157, %156 : vector<2x32xf32>
    %159 = arith.divf %157, %158 : vector<2x32xf32>
    %160 = vector.extract_strided_slice %147 {offsets = [0, 64], sizes = [2, 32], strides = [1, 1]} : vector<2x128xf32> to vector<2x32xf32>
    %161 = math.tanh %160 : vector<2x32xf32>
    %162 = vector.extract_strided_slice %147 {offsets = [0, 96], sizes = [2, 32], strides = [1, 1]} : vector<2x128xf32> to vector<2x32xf32>
    %163 = arith.negf %162 : vector<2x32xf32>
    %164 = math.exp %163 : vector<2x32xf32>
    %cst_51 = arith.constant 1.000000e+00 : f32
    %165 = vector.broadcast %cst_51 : f32 to vector<2x32xf32>
    %166 = arith.addf %165, %164 : vector<2x32xf32>
    %167 = arith.divf %165, %166 : vector<2x32xf32>
    %168 = arith.mulf %159, %141 : vector<2x32xf32>
    %169 = arith.mulf %153, %161 : vector<2x32xf32>
    %170 = arith.addf %168, %169 : vector<2x32xf32>
    %171 = math.tanh %170 : vector<2x32xf32>
    %172 = arith.mulf %167, %171 : vector<2x32xf32>
    %c8 = arith.constant 8 : index
    %c0_52 = arith.constant 0 : index
    %173 = vector.load %arg13[%c8, %c0_52] : memref<16x32xf32, #tpu.memory_space<vmem>>, vector<2x32xf32>
    tpu.vector_store %arg13[%c8, %c0_52], %172 {strides = array<i32>} : memref<16x32xf32, #tpu.memory_space<vmem>>, vector<2x32xf32>,
    %174 = vector.extract_strided_slice %27 {offsets = [10, 0], sizes = [2, 128], strides = [1, 1]} : vector<16x128xf32> to vector<2x128xf32>
    %cst_53 = arith.constant dense<0.000000e+00> : vector<2x128xf32>
    %175 = tpu.matmul %172, %28, %cst_53 {dimension_numbers = #tpu.dot_dimension_numbers<[1], [0], [0], [1], [0, 0, 1, 1], [], []>} : vector<2x32xf32>, vector<32x128xf32>, vector<2x128xf32> -> vector<2x128xf32>
    %176 = arith.addf %174, %175 : vector<2x128xf32>
    %177 = vector.extract_strided_slice %176 {offsets = [0, 0], sizes = [2, 32], strides = [1, 1]} : vector<2x128xf32> to vector<2x32xf32>
    %178 = arith.negf %177 : vector<2x32xf32>
    %179 = math.exp %178 : vector<2x32xf32>
    %cst_54 = arith.constant 1.000000e+00 : f32
    %180 = vector.broadcast %cst_54 : f32 to vector<2x32xf32>
    %181 = arith.addf %180, %179 : vector<2x32xf32>
    %182 = arith.divf %180, %181 : vector<2x32xf32>
    %183 = vector.extract_strided_slice %176 {offsets = [0, 32], sizes = [2, 32], strides = [1, 1]} : vector<2x128xf32> to vector<2x32xf32>
    %184 = arith.negf %183 : vector<2x32xf32>
    %185 = math.exp %184 : vector<2x32xf32>
    %cst_55 = arith.constant 1.000000e+00 : f32
    %186 = vector.broadcast %cst_55 : f32 to vector<2x32xf32>
    %187 = arith.addf %186, %185 : vector<2x32xf32>
    %188 = arith.divf %186, %187 : vector<2x32xf32>
    %189 = vector.extract_strided_slice %176 {offsets = [0, 64], sizes = [2, 32], strides = [1, 1]} : vector<2x128xf32> to vector<2x32xf32>
    %190 = math.tanh %189 : vector<2x32xf32>
    %191 = vector.extract_strided_slice %176 {offsets = [0, 96], sizes = [2, 32], strides = [1, 1]} : vector<2x128xf32> to vector<2x32xf32>
    %192 = arith.negf %191 : vector<2x32xf32>
    %193 = math.exp %192 : vector<2x32xf32>
    %cst_56 = arith.constant 1.000000e+00 : f32
    %194 = vector.broadcast %cst_56 : f32 to vector<2x32xf32>
    %195 = arith.addf %194, %193 : vector<2x32xf32>
    %196 = arith.divf %194, %195 : vector<2x32xf32>
    %197 = arith.mulf %188, %170 : vector<2x32xf32>
    %198 = arith.mulf %182, %190 : vector<2x32xf32>
    %199 = arith.addf %197, %198 : vector<2x32xf32>
    %200 = math.tanh %199 : vector<2x32xf32>
    %201 = arith.mulf %196, %200 : vector<2x32xf32>
    %c10 = arith.constant 10 : index
    %c0_57 = arith.constant 0 : index
    %202 = vector.load %arg13[%c10, %c0_57] : memref<16x32xf32, #tpu.memory_space<vmem>>, vector<2x32xf32>
    tpu.vector_store %arg13[%c10, %c0_57], %201 {strides = array<i32>} : memref<16x32xf32, #tpu.memory_space<vmem>>, vector<2x32xf32>,
    %203 = vector.extract_strided_slice %27 {offsets = [12, 0], sizes = [2, 128], strides = [1, 1]} : vector<16x128xf32> to vector<2x128xf32>
    %cst_58 = arith.constant dense<0.000000e+00> : vector<2x128xf32>
    %204 = tpu.matmul %201, %28, %cst_58 {dimension_numbers = #tpu.dot_dimension_numbers<[1], [0], [0], [1], [0, 0, 1, 1], [], []>} : vector<2x32xf32>, vector<32x128xf32>, vector<2x128xf32> -> vector<2x128xf32>
    %205 = arith.addf %203, %204 : vector<2x128xf32>
    %206 = vector.extract_strided_slice %205 {offsets = [0, 0], sizes = [2, 32], strides = [1, 1]} : vector<2x128xf32> to vector<2x32xf32>
    %207 = arith.negf %206 : vector<2x32xf32>
    %208 = math.exp %207 : vector<2x32xf32>
    %cst_59 = arith.constant 1.000000e+00 : f32
    %209 = vector.broadcast %cst_59 : f32 to vector<2x32xf32>
    %210 = arith.addf %209, %208 : vector<2x32xf32>
    %211 = arith.divf %209, %210 : vector<2x32xf32>
    %212 = vector.extract_strided_slice %205 {offsets = [0, 32], sizes = [2, 32], strides = [1, 1]} : vector<2x128xf32> to vector<2x32xf32>
    %213 = arith.negf %212 : vector<2x32xf32>
    %214 = math.exp %213 : vector<2x32xf32>
    %cst_60 = arith.constant 1.000000e+00 : f32
    %215 = vector.broadcast %cst_60 : f32 to vector<2x32xf32>
    %216 = arith.addf %215, %214 : vector<2x32xf32>
    %217 = arith.divf %215, %216 : vector<2x32xf32>
    %218 = vector.extract_strided_slice %205 {offsets = [0, 64], sizes = [2, 32], strides = [1, 1]} : vector<2x128xf32> to vector<2x32xf32>
    %219 = math.tanh %218 : vector<2x32xf32>
    %220 = vector.extract_strided_slice %205 {offsets = [0, 96], sizes = [2, 32], strides = [1, 1]} : vector<2x128xf32> to vector<2x32xf32>
    %221 = arith.negf %220 : vector<2x32xf32>
    %222 = math.exp %221 : vector<2x32xf32>
    %cst_61 = arith.constant 1.000000e+00 : f32
    %223 = vector.broadcast %cst_61 : f32 to vector<2x32xf32>
    %224 = arith.addf %223, %222 : vector<2x32xf32>
    %225 = arith.divf %223, %224 : vector<2x32xf32>
    %226 = arith.mulf %217, %199 : vector<2x32xf32>
    %227 = arith.mulf %211, %219 : vector<2x32xf32>
    %228 = arith.addf %226, %227 : vector<2x32xf32>
    %229 = math.tanh %228 : vector<2x32xf32>
    %230 = arith.mulf %225, %229 : vector<2x32xf32>
    %c12 = arith.constant 12 : index
    %c0_62 = arith.constant 0 : index
    %231 = vector.load %arg13[%c12, %c0_62] : memref<16x32xf32, #tpu.memory_space<vmem>>, vector<2x32xf32>
    tpu.vector_store %arg13[%c12, %c0_62], %230 {strides = array<i32>} : memref<16x32xf32, #tpu.memory_space<vmem>>, vector<2x32xf32>,
    %232 = vector.extract_strided_slice %27 {offsets = [14, 0], sizes = [2, 128], strides = [1, 1]} : vector<16x128xf32> to vector<2x128xf32>
    %cst_63 = arith.constant dense<0.000000e+00> : vector<2x128xf32>
    %233 = tpu.matmul %230, %28, %cst_63 {dimension_numbers = #tpu.dot_dimension_numbers<[1], [0], [0], [1], [0, 0, 1, 1], [], []>} : vector<2x32xf32>, vector<32x128xf32>, vector<2x128xf32> -> vector<2x128xf32>
    %234 = arith.addf %232, %233 : vector<2x128xf32>
    %235 = vector.extract_strided_slice %234 {offsets = [0, 0], sizes = [2, 32], strides = [1, 1]} : vector<2x128xf32> to vector<2x32xf32>
    %236 = arith.negf %235 : vector<2x32xf32>
    %237 = math.exp %236 : vector<2x32xf32>
    %cst_64 = arith.constant 1.000000e+00 : f32
    %238 = vector.broadcast %cst_64 : f32 to vector<2x32xf32>
    %239 = arith.addf %238, %237 : vector<2x32xf32>
    %240 = arith.divf %238, %239 : vector<2x32xf32>
    %241 = vector.extract_strided_slice %234 {offsets = [0, 32], sizes = [2, 32], strides = [1, 1]} : vector<2x128xf32> to vector<2x32xf32>
    %242 = arith.negf %241 : vector<2x32xf32>
    %243 = math.exp %242 : vector<2x32xf32>
    %cst_65 = arith.constant 1.000000e+00 : f32
    %244 = vector.broadcast %cst_65 : f32 to vector<2x32xf32>
    %245 = arith.addf %244, %243 : vector<2x32xf32>
    %246 = arith.divf %244, %245 : vector<2x32xf32>
    %247 = vector.extract_strided_slice %234 {offsets = [0, 64], sizes = [2, 32], strides = [1, 1]} : vector<2x128xf32> to vector<2x32xf32>
    %248 = math.tanh %247 : vector<2x32xf32>
    %249 = vector.extract_strided_slice %234 {offsets = [0, 96], sizes = [2, 32], strides = [1, 1]} : vector<2x128xf32> to vector<2x32xf32>
    %250 = arith.negf %249 : vector<2x32xf32>
    %251 = math.exp %250 : vector<2x32xf32>
    %cst_66 = arith.constant 1.000000e+00 : f32
    %252 = vector.broadcast %cst_66 : f32 to vector<2x32xf32>
    %253 = arith.addf %252, %251 : vector<2x32xf32>
    %254 = arith.divf %252, %253 : vector<2x32xf32>
    %255 = arith.mulf %246, %228 : vector<2x32xf32>
    %256 = arith.mulf %240, %248 : vector<2x32xf32>
    %257 = arith.addf %255, %256 : vector<2x32xf32>
    %258 = math.tanh %257 : vector<2x32xf32>
    %259 = arith.mulf %254, %258 : vector<2x32xf32>
    %c14 = arith.constant 14 : index
    %c0_67 = arith.constant 0 : index
    %260 = vector.load %arg13[%c14, %c0_67] : memref<16x32xf32, #tpu.memory_space<vmem>>, vector<2x32xf32>
    tpu.vector_store %arg13[%c14, %c0_67], %259 {strides = array<i32>} : memref<16x32xf32, #tpu.memory_space<vmem>>, vector<2x32xf32>,
    %c0_68 = arith.constant 0 : index
    %c0_69 = arith.constant 0 : index
    %261 = vector.load %arg13[%c0_68, %c0_69] : memref<16x32xf32, #tpu.memory_space<vmem>>, vector<16x32xf32>
    %c0_70 = arith.constant 0 : index
    %c0_71 = arith.constant 0 : index
    %262 = vector.load %arg10[%c0_70, %c0_71] : memref<32x48xf32, #tpu.memory_space<vmem>>, vector<32x48xf32>
    %cst_72 = arith.constant dense<0.000000e+00> : vector<16x48xf32>
    %263 = tpu.matmul %261, %262, %cst_72 {dimension_numbers = #tpu.dot_dimension_numbers<[1], [0], [0], [1], [0, 0, 1, 1], [], []>} : vector<16x32xf32>, vector<32x48xf32>, vector<16x48xf32> -> vector<16x48xf32>
    %c0_73 = arith.constant 0 : index
    %c0_74 = arith.constant 0 : index
    %264 = vector.load %arg11[%c0_73, %c0_74] : memref<1x48xf32, #tpu.memory_space<vmem>>, vector<1x48xf32>
    %265 = vector.broadcast %264 : vector<1x48xf32> to vector<16x48xf32>
    %266 = arith.addf %263, %265 : vector<16x48xf32>
    %c0_75 = arith.constant 0 : index
    %c0_76 = arith.constant 0 : index
    %267 = vector.load %arg12[%c0_75, %c0_76] : memref<16x48xf32, #tpu.memory_space<vmem>>, vector<16x48xf32>
    tpu.vector_store %arg12[%c0_75, %c0_76], %266 {strides = array<i32>} : memref<16x48xf32, #tpu.memory_space<vmem>>, vector<16x48xf32>,
    return
  }
}

</mosaic_0001>

<llo_original>
// kernel: captioner_forward.1
$region0: #{captioner_forward.1}
  #allocation0 [shape = 'u32[]', space=smem, size = 0x4, offset = 0x4, fixed_abs, tag = 'smem constant byte address 0x4 - core index']
  #allocation1 [shape = 'u32[144,128]{1,0:T(1,128)}', space=vmem, size = 0x12000, scoped, tag = 'internal scratch']
  #allocation2 [shape = 'f32[16,32]{1,0:T(8,128)}', space=vmem, size = 0x2000, scoped, tag = 'scratch operand']
  %s0 = inlined_call_operand.vmem [shape: s32[16,1], index: 0, kind: input, shape index: {}]
  %s1 = inlined_call_operand.vmem [shape: f32[2,3,256], index: 1, kind: input, shape index: {}]
  %s2 = inlined_call_operand.vmem [shape: f32[48,32], index: 2, kind: input, shape index: {}]
  %s3 = inlined_call_operand.vmem [shape: f32[3,32], index: 3, kind: input, shape index: {}]
  %s4 = inlined_call_operand.vmem [shape: f32[1,32], index: 4, kind: input, shape index: {}]
  %s5 = inlined_call_operand.vmem [shape: f32[3,32], index: 5, kind: input, shape index: {}]
  %s6 = inlined_call_operand.vmem [shape: f32[1,32], index: 6, kind: input, shape index: {}]
  %s7 = inlined_call_operand.vmem [shape: f32[32,128], index: 7, kind: input, shape index: {}]
  %s8 = inlined_call_operand.vmem [shape: f32[32,128], index: 8, kind: input, shape index: {}]
  %s9 = inlined_call_operand.vmem [shape: f32[1,128], index: 9, kind: input, shape index: {}]
  %s10 = inlined_call_operand.vmem [shape: f32[32,48], index: 10, kind: input, shape index: {}]
  %s11 = inlined_call_operand.vmem [shape: f32[1,48], index: 11, kind: input, shape index: {}]
  %s12 = inlined_call_operand.vmem [shape: f32[16,48], index: 12, kind: output, shape index: {}]
  %s13 = sld [smem:[#allocation0]]
  $region58: #{captioner_forward.1} parent=0
    _
  %s15 = ssub.s32 1, %s13
  %s16 = scalar_select 0, %s15, %s13
  // Predicated region
  $region2: #{captioner_forward.1} parent=0 // pred_check
    _
  $region3: #{captioner_forward.1} parent=0 // pred_check_branch
    %18 = sbr.rel (0) target = $region5
  $region4: #{captioner_forward.1} parent=0 // pred_region
    _
  $region5: #{captioner_forward.1} parent=0 // pred_fallthru
    _
  // Predicated region
  $region6: #{captioner_forward.1} parent=0 // pred_check
    _
  $region7: #{captioner_forward.1} parent=0 // pred_check_branch
    %20 = sbr.rel (0) target = $region9
  $region8: #{captioner_forward.1} parent=0 // pred_region
    _
  $region9: #{captioner_forward.1} parent=0 // pred_fallthru
    _
  // Predicated region
  $region10: #{captioner_forward.1} parent=0 // pred_check
    _
  $region11: #{captioner_forward.1} parent=0 // pred_check_branch
    %22 = sbr.rel (0) target = $region13
  $region12: #{captioner_forward.1} parent=0 // pred_region
    _
  $region13: #{captioner_forward.1} parent=0 // pred_fallthru
    _
  // Predicated region
  $region14: #{captioner_forward.1} parent=0 // pred_check
    _
  $region15: #{captioner_forward.1} parent=0 // pred_check_branch
    %24 = sbr.rel (0) target = $region17
  $region16: #{captioner_forward.1} parent=0 // pred_region
    _
  $region17: #{captioner_forward.1} parent=0 // pred_fallthru
    _
  // Predicated region
  $region18: #{captioner_forward.1} parent=0 // pred_check
    _
  $region19: #{captioner_forward.1} parent=0 // pred_check_branch
    %26 = sbr.rel (0) target = $region21
  $region20: #{captioner_forward.1} parent=0 // pred_region
    _
  $region21: #{captioner_forward.1} parent=0 // pred_fallthru
    _
  // Predicated region
  $region22: #{captioner_forward.1} parent=0 // pred_check
    _
  $region23: #{captioner_forward.1} parent=0 // pred_check_branch
    %28 = sbr.rel (0) target = $region25
  $region24: #{captioner_forward.1} parent=0 // pred_region
    _
  $region25: #{captioner_forward.1} parent=0 // pred_fallthru
    _
  // Predicated region
  $region26: #{captioner_forward.1} parent=0 // pred_check
    _
  $region27: #{captioner_forward.1} parent=0 // pred_check_branch
    %30 = sbr.rel (0) target = $region29
  $region28: #{captioner_forward.1} parent=0 // pred_region
    _
  $region29: #{captioner_forward.1} parent=0 // pred_fallthru
    _
  // Predicated region
  $region30: #{captioner_forward.1} parent=0 // pred_check
    _
  $region31: #{captioner_forward.1} parent=0 // pred_check_branch
    %32 = sbr.rel (0) target = $region33
  $region32: #{captioner_forward.1} parent=0 // pred_region
    _
  $region33: #{captioner_forward.1} parent=0 // pred_fallthru
    _
  // Predicated region
  $region34: #{captioner_forward.1} parent=0 // pred_check
    _
  $region35: #{captioner_forward.1} parent=0 // pred_check_branch
    %34 = sbr.rel (0) target = $region37
  $region36: #{captioner_forward.1} parent=0 // pred_region
    _
  $region37: #{captioner_forward.1} parent=0 // pred_fallthru
    _
  // Predicated region
  $region38: #{captioner_forward.1} parent=0 // pred_check
    _
  $region39: #{captioner_forward.1} parent=0 // pred_check_branch
    %36 = sbr.rel (0) target = $region41
  $region40: #{captioner_forward.1} parent=0 // pred_region
    _
  $region41: #{captioner_forward.1} parent=0 // pred_fallthru
    _
  // Predicated region
  $region42: #{captioner_forward.1} parent=0 // pred_check
    _
  $region43: #{captioner_forward.1} parent=0 // pred_check_branch
    %38 = sbr.rel (0) target = $region45
  $region44: #{captioner_forward.1} parent=0 // pred_region
    _
  $region45: #{captioner_forward.1} parent=0 // pred_fallthru
    _
  // Predicated region
  $region46: #{captioner_forward.1} parent=0 // pred_check
    _
  $region47: #{captioner_forward.1} parent=0 // pred_check_branch
    %40 = sbr.rel (0) target = $region49
  $region48: #{captioner_forward.1} parent=0 // pred_region
    _
  $region49: #{captioner_forward.1} parent=0 // pred_fallthru
    _
  %v41 = vld [vmem:[%s1] sm:$0x77]
  %v42 = vld [vmem:[%s1 + $0x8] sm:$0x77]
  %v45 = vcombine.high %v41, %v41
  %v46 = vcombine.high %v42, %v42
  %vm49 = vcmask 1042432
  %v50 = vsel %vm49, %v41, 0.0
  %v51 = vsel %vm49, %v45, 0.0
  %v52 = vadd.f32 %v50, %v51
  %53 = vadd.xlane.f32.xlu0 %v52
  %v54 = vpop.xlane.xlu0 %53
  %v55 = vsel %vm49, %v42, 0.0
  %v56 = vsel %vm49, %v46, 0.0
  %v57 = vadd.f32 %v55, %v56
  %58 = vadd.xlane.f32.xlu0 %v57
  %v59 = vpop.xlane.xlu0 %58
  %v60 = vrcp.pop 256.0
  %v61 = vmul.f32 %v54, %v60
  %v62 = vmul.f32 %v59, %v60
  %v63 = vld [vmem:[%s3] sm:$0x7]
  %v64 = vld [vmem:[%s4] sm:$0x1]
  %v66 = vlaneseq
  %v67 = vshrl.u32 %v66, 7
  %v68 = vsub.s32 0, %v67
  %v69 = vrot.slane %v64, %v68
  %v73 = vlaneseq
  %v74 = vand.u32 %v73, 127
  %v75 = vlaneseq
  %v76 = vshrl.u32 %v75, 7
  %v77 = vsub.s32 %v74, %v76
  %v78 = vrot.slane %v61, %v77
  %v79 = vlaneseq
  %v80 = vshrl.u32 %v79, 7
  %v81 = vsub.s32 %v74, %v80
  %v82 = vrot.slane %v62, %v81
  %vm83 = vcmask 1041409
  %v84 = vsel %vm83, %v82, %v78
  %vm85 = vcmask 23552
  %v86 = vsel %vm85, %v84, 0
  %v89 = vsel %vm49, %v63, 0
  %91 = vmatprep.subr.mxu0 0.0
  %92 = vmatpush1.msra.mxu0 0.0
  %93 = vmatprep.subr.mxu0 0.0
  %94 = vmatpush1.msra.mxu0 0.0
  %95 = vmatprep.subr.mxu0 0.0
  %96 = vmatpush1.msra.mxu0 0.0
  %97 = vmatprep.subr.mxu0 0.0
  %98 = vmatpush1.msra.mxu0 0.0
  %99 = vmatprep.subr.mxu0 0.0
  %100 = vmatpush1.msra.mxu0 0.0
  %101 = vmatprep.subr.mxu0 0.0
  %102 = vmatpush1.msra.mxu0 0.0
  %103 = vmatprep.subr.mxu0 0.0
  %104 = vmatpush1.msra.mxu0 0.0
  %105 = vmatprep.subr.mxu0 0.0
  %106 = vmatpush1.msra.mxu0 0.0
  %107 = vmatprep.subr.mxu0 0.0
  %108 = vmatpush1.msra.mxu0 0.0
  %109 = vmatprep.subr.mxu0 0.0
  %110 = vmatpush1.msra.mxu0 0.0
  %111 = vmatprep.subr.mxu0 0.0
  %112 = vmatpush1.msra.mxu0 0.0
  %113 = vmatprep.subr.mxu0 0.0
  %114 = vmatpush1.msra.mxu0 0.0
  %115 = vmatprep.subr.mxu0 0.0
  %116 = vmatpush1.msra.mxu0 0.0
  %117 = vmatprep.subr.mxu0 0.0
  %118 = vmatpush1.msra.mxu0 0.0
  %119 = vmatprep.subr.mxu0 0.0
  %120 = vmatpush1.msra.mxu0 0.0
  %121 = vmatprep.subr.mxu0 0.0
  %122 = vmatpush1.msra.mxu0 %v89
  %123 = vmatprep.subr.mxu0 0.0
  %124 = vmatpush2.msra.mxu0 0.0
  %125 = vmatprep.subr.mxu0 0.0
  %126 = vmatpush2.msra.mxu0 0.0
  %127 = vmatprep.subr.mxu0 0.0
  %128 = vmatpush2.msra.mxu0 0.0
  %129 = vmatprep.subr.mxu0 0.0
  %130 = vmatpush2.msra.mxu0 0.0
  %131 = vmatprep.subr.mxu0 0.0
  %132 = vmatpush2.msra.mxu0 0.0
  %133 = vmatprep.subr.mxu0 0.0
  %134 = vmatpush2.msra.mxu0 0.0
  %135 = vmatprep.subr.mxu0 0.0
  %136 = vmatpush2.msra.mxu0 0.0
  %137 = vmatprep.subr.mxu0 0.0
  %138 = vmatpush2.msra.mxu0 0.0
  %139 = vmatprep.subr.mxu0 0.0
  %140 = vmatpush2.msra.mxu0 0.0
  %141 = vmatprep.subr.mxu0 0.0
  %142 = vmatpush2.msra.mxu0 0.0
  %143 = vmatprep.subr.mxu0 0.0
  %144 = vmatpush2.msra.mxu0 0.0
  %145 = vmatprep.subr.mxu0 0.0
  %146 = vmatpush2.msra.mxu0 0.0
  %147 = vmatprep.subr.mxu0 0.0
  %148 = vmatpush2.msra.mxu0 0.0
  %149 = vmatprep.subr.mxu0 0.0
  %150 = vmatpush2.msra.mxu0 0.0
  %151 = vmatprep.subr.mxu0 0.0
  %152 = vmatpush2.msra.mxu0 0.0
  %153 = vmatprep.subr.mxu0 0.0
  %154 = vmatpush2.msra.mxu0 0.0
  %155 = vmatprep.mubr.f32.mxu0 0.0
  %156 = vmatmul.mubr.f32.gmra.mxu0 %v86
  %v157 = vpop.f32.mrf.mxu0
  %v158 = vadd.f32 %v69, %v157
  %v159 = vpop.f32.mrf.mxu0
  %160 = vdwg.mxu0
  %v161 = vld [vmem:[%s5] sm:$0x7]
  %v162 = vld [vmem:[%s6] sm:$0x1]
  %v164 = vlaneseq
  %v165 = vshrl.u32 %v164, 7
  %v166 = vsub.s32 0, %v165
  %v167 = vrot.slane %v162, %v166
  %v170 = vsel %vm49, %v161, 0
  %172 = vmatprep.subr.mxu0 0.0
  %173 = vmatpush1.msra.mxu0 0.0
  %174 = vmatprep.subr.mxu0 0.0
  %175 = vmatpush1.msra.mxu0 0.0
  %176 = vmatprep.subr.mxu0 0.0
  %177 = vmatpush1.msra.mxu0 0.0
  %178 = vmatprep.subr.mxu0 0.0
  %179 = vmatpush1.msra.mxu0 0.0
  %180 = vmatprep.subr.mxu0 0.0
  %181 = vmatpush1.msra.mxu0 0.0
  %182 = vmatprep.subr.mxu0 0.0
  %183 = vmatpush1.msra.mxu0 0.0
  %184 = vmatprep.subr.mxu0 0.0
  %185 = vmatpush1.msra.mxu0 0.0
  %186 = vmatprep.subr.mxu0 0.0
  %187 = vmatpush1.msra.mxu0 0.0
  %188 = vmatprep.subr.mxu0 0.0
  %189 = vmatpush1.msra.mxu0 0.0
  %190 = vmatprep.subr.mxu0 0.0
  %191 = vmatpush1.msra.mxu0 0.0
  %192 = vmatprep.subr.mxu0 0.0
  %193 = vmatpush1.msra.mxu0 0.0
  %194 = vmatprep.subr.mxu0 0.0
  %195 = vmatpush1.msra.mxu0 0.0
  %196 = vmatprep.subr.mxu0 0.0
  %197 = vmatpush1.msra.mxu0 0.0
  %198 = vmatprep.subr.mxu0 0.0
  %199 = vmatpush1.msra.mxu0 0.0
  %200 = vmatprep.subr.mxu0 0.0
  %201 = vmatpush1.msra.mxu0 0.0
  %202 = vmatprep.subr.mxu0 0.0
  %203 = vmatpush1.msra.mxu0 %v170
  %204 = vmatprep.subr.mxu0 0.0
  %205 = vmatpush2.msra.mxu0 0.0
  %206 = vmatprep.subr.mxu0 0.0
  %207 = vmatpush2.msra.mxu0 0.0
  %208 = vmatprep.subr.mxu0 0.0
  %209 = vmatpush2.msra.mxu0 0.0
  %210 = vmatprep.subr.mxu0 0.0
  %211 = vmatpush2.msra.mxu0 0.0
  %212 = vmatprep.subr.mxu0 0.0
  %213 = vmatpush2.msra.mxu0 0.0
  %214 = vmatprep.subr.mxu0 0.0
  %215 = vmatpush2.msra.mxu0 0.0
  %216 = vmatprep.subr.mxu0 0.0
  %217 = vmatpush2.msra.mxu0 0.0
  %218 = vmatprep.subr.mxu0 0.0
  %219 = vmatpush2.msra.mxu0 0.0
  %220 = vmatprep.subr.mxu0 0.0
  %221 = vmatpush2.msra.mxu0 0.0
  %222 = vmatprep.subr.mxu0 0.0
  %223 = vmatpush2.msra.mxu0 0.0
  %224 = vmatprep.subr.mxu0 0.0
  %225 = vmatpush2.msra.mxu0 0.0
  %226 = vmatprep.subr.mxu0 0.0
  %227 = vmatpush2.msra.mxu0 0.0
  %228 = vmatprep.subr.mxu0 0.0
  %229 = vmatpush2.msra.mxu0 0.0
  %230 = vmatprep.subr.mxu0 0.0
  %231 = vmatpush2.msra.mxu0 0.0
  %232 = vmatprep.subr.mxu0 0.0
  %233 = vmatpush2.msra.mxu0 0.0
  %234 = vmatprep.subr.mxu0 0.0
  %235 = vmatpush2.msra.mxu0 0.0
  %236 = vmatprep.mubr.f32.mxu0 0.0
  %237 = vmatmul.mubr.f32.gmra.mxu0 %v86
  %v238 = vpop.f32.mrf.mxu0
  %v239 = vadd.f32 %v167, %v238
  %v240 = vpop.f32.mrf.mxu0
  %241 = vdwg.mxu0
  %v242 = vld [vmem:[%s0] sm:$0xff]
  %v243 = vld [vmem:[%s0 + $0x8] sm:$0xff]
  %244 = vset.pattern.permute.xlu0 0
  %245 = vperm.xlu0 %244, %v242
  %v246 = vpop.permute.xlu0 %245
  %247 = vset.pattern.permute.xlu0 0
  %248 = vperm.xlu0 %247, %v243
  %v249 = vpop.permute.xlu0 %248
  %vm250 = vcmp.eq.s32.totalorder %v246, %v74
  %vm251 = vcmp.eq.s32.totalorder %v249, %v74
  %v252 = vsel %vm250, 1.0, 0.0
  %v253 = vsel %vm251, 1.0, 0.0
  %v254 = vld [vmem:[%s2] sm:$0xff]
  %v255 = vld [vmem:[%s2 + $0x8] sm:$0xff]
  %v256 = vld [vmem:[%s2 + $0x10] sm:$0xff]
  %v257 = vld [vmem:[%s2 + $0x18] sm:$0xff]
  %v258 = vld [vmem:[%s2 + $0x20] sm:$0xff]
  %v259 = vld [vmem:[%s2 + $0x28] sm:$0xff]
  %vm260 = vcmask 392192
  %v262 = vsel %vm260, %v252, 0
  %v265 = vsel %vm260, %v253, 0
  %267 = vmatprep.subr.mxu0 0.0
  %268 = vmatpush1.msra.mxu0 0.0
  %269 = vmatprep.subr.mxu0 0.0
  %270 = vmatpush1.msra.mxu0 0.0
  %271 = vmatprep.subr.mxu0 0.0
  %272 = vmatpush1.msra.mxu0 0.0
  %273 = vmatprep.subr.mxu0 0.0
  %274 = vmatpush1.msra.mxu0 0.0
  %275 = vmatprep.subr.mxu0 0.0
  %276 = vmatpush1.msra.mxu0 0.0
  %277 = vmatprep.subr.mxu0 0.0
  %278 = vmatpush1.msra.mxu0 0.0
  %279 = vmatprep.subr.mxu0 0.0
  %280 = vmatpush1.msra.mxu0 0.0
  %281 = vmatprep.subr.mxu0 0.0
  %282 = vmatpush1.msra.mxu0 0.0
  %283 = vmatprep.subr.mxu0 0.0
  %284 = vmatpush1.msra.mxu0 0.0
  %285 = vmatprep.subr.mxu0 0.0
  %286 = vmatpush1.msra.mxu0 0.0
  %287 = vmatprep.subr.mxu0 0.0
  %288 = vmatpush1.msra.mxu0 %v259
  %289 = vmatprep.subr.mxu0 0.0
  %290 = vmatpush1.msra.mxu0 %v258
  %291 = vmatprep.subr.mxu0 0.0
  %292 = vmatpush1.msra.mxu0 %v257
  %293 = vmatprep.subr.mxu0 0.0
  %294 = vmatpush1.msra.mxu0 %v256
  %295 = vmatprep.subr.mxu0 0.0
  %296 = vmatpush1.msra.mxu0 %v255
  %297 = vmatprep.subr.mxu0 0.0
  %298 = vmatpush1.msra.mxu0 %v254
  %299 = vmatprep.subr.mxu0 0.0
  %300 = vmatpush2.msra.mxu0 0.0
  %301 = vmatprep.subr.mxu0 0.0
  %302 = vmatpush2.msra.mxu0 0.0
  %303 = vmatprep.subr.mxu0 0.0
  %304 = vmatpush2.msra.mxu0 0.0
  %305 = vmatprep.subr.mxu0 0.0
  %306 = vmatpush2.msra.mxu0 0.0
  %307 = vmatprep.subr.mxu0 0.0
  %308 = vmatpush2.msra.mxu0 0.0
  %309 = vmatprep.subr.mxu0 0.0
  %310 = vmatpush2.msra.mxu0 0.0
  %311 = vmatprep.subr.mxu0 0.0
  %312 = vmatpush2.msra.mxu0 0.0
  %313 = vmatprep.subr.mxu0 0.0
  %314 = vmatpush2.msra.mxu0 0.0
  %315 = vmatprep.subr.mxu0 0.0
  %316 = vmatpush2.msra.mxu0 0.0
  %317 = vmatprep.subr.mxu0 0.0
  %318 = vmatpush2.msra.mxu0 0.0
  %319 = vmatprep.subr.mxu0 0.0
  %320 = vmatpush2.msra.mxu0 0.0
  %321 = vmatprep.subr.mxu0 0.0
  %322 = vmatpush2.msra.mxu0 0.0
  %323 = vmatprep.subr.mxu0 0.0
  %324 = vmatpush2.msra.mxu0 0.0
  %325 = vmatprep.subr.mxu0 0.0
  %326 = vmatpush2.msra.mxu0 0.0
  %327 = vmatprep.subr.mxu0 0.0
  %328 = vmatpush2.msra.mxu0 0.0
  %329 = vmatprep.subr.mxu0 0.0
  %330 = vmatpush2.msra.mxu0 0.0
  %331 = vmatprep.mubr.f32.mxu0 0.0
  %332 = vmatmul.mubr.f32.gmra.mxu0 %v262
  %v333 = vpop.f32.mrf.mxu0
  %v334 = vadd.f32 0.0, %v333
  %v335 = vpop.f32.mrf.mxu0
  %336 = vmatprep.mubr.f32.mxu0 0.0
  %337 = vmatmul.mubr.f32.gmra.mxu0 %v265
  %v338 = vpop.f32.mrf.mxu0
  %v339 = vadd.f32 0.0, %v338
  %v340 = vpop.f32.mrf.mxu0
  %341 = vdwg.mxu0
  %v342 = vld [vmem:[%s7] sm:$0xff]
  %v343 = vld [vmem:[%s7 + $0x8] sm:$0xff]
  %v344 = vld [vmem:[%s7 + $0x10] sm:$0xff]
  %v345 = vld [vmem:[%s7 + $0x18] sm:$0xff]
  %v346 = vld [vmem:[%s9] sm:$0x1]
  %v348 = vlaneseq
  %v349 = vshrl.u32 %v348, 7
  %v350 = vsub.s32 0, %v349
  %v351 = vrot.slane %v346, %v350
  %vm353 = vcmask 261120
  %v355 = vsel %vm353, %v334, 0
  %v358 = vsel %vm353, %v339, 0
  %360 = vmatprep.subr.mxu0 0.0
  %361 = vmatpush1.msra.mxu0 0.0
  %362 = vmatprep.subr.mxu0 0.0
  %363 = vmatpush1.msra.mxu0 0.0
  %364 = vmatprep.subr.mxu0 0.0
  %365 = vmatpush1.msra.mxu0 0.0
  %366 = vmatprep.subr.mxu0 0.0
  %367 = vmatpush1.msra.mxu0 0.0
  %368 = vmatprep.subr.mxu0 0.0
  %369 = vmatpush1.msra.mxu0 0.0
  %370 = vmatprep.subr.mxu0 0.0
  %371 = vmatpush1.msra.mxu0 0.0
  %372 = vmatprep.subr.mxu0 0.0
  %373 = vmatpush1.msra.mxu0 0.0
  %374 = vmatprep.subr.mxu0 0.0
  %375 = vmatpush1.msra.mxu0 0.0
  %376 = vmatprep.subr.mxu0 0.0
  %377 = vmatpush1.msra.mxu0 0.0
  %378 = vmatprep.subr.mxu0 0.0
  %379 = vmatpush1.msra.mxu0 0.0
  %380 = vmatprep.subr.mxu0 0.0
  %381 = vmatpush1.msra.mxu0 0.0
  %382 = vmatprep.subr.mxu0 0.0
  %383 = vmatpush1.msra.mxu0 0.0
  %384 = vmatprep.subr.mxu0 0.0
  %385 = vmatpush1.msra.mxu0 %v345
  %386 = vmatprep.subr.mxu0 0.0
  %387 = vmatpush1.msra.mxu0 %v344
  %388 = vmatprep.subr.mxu0 0.0
  %389 = vmatpush1.msra.mxu0 %v343
  %390 = vmatprep.subr.mxu0 0.0
  %391 = vmatpush1.msra.mxu0 %v342
  %392 = vmatprep.subr.mxu0 0.0
  %393 = vmatpush2.msra.mxu0 0.0
  %394 = vmatprep.subr.mxu0 0.0
  %395 = vmatpush2.msra.mxu0 0.0
  %396 = vmatprep.subr.mxu0 0.0
  %397 = vmatpush2.msra.mxu0 0.0
  %398 = vmatprep.subr.mxu0 0.0
  %399 = vmatpush2.msra.mxu0 0.0
  %400 = vmatprep.subr.mxu0 0.0
  %401 = vmatpush2.msra.mxu0 0.0
  %402 = vmatprep.subr.mxu0 0.0
  %403 = vmatpush2.msra.mxu0 0.0
  %404 = vmatprep.subr.mxu0 0.0
  %405 = vmatpush2.msra.mxu0 0.0
  %406 = vmatprep.subr.mxu0 0.0
  %407 = vmatpush2.msra.mxu0 0.0
  %408 = vmatprep.subr.mxu0 0.0
  %409 = vmatpush2.msra.mxu0 0.0
  %410 = vmatprep.subr.mxu0 0.0
  %411 = vmatpush2.msra.mxu0 0.0
  %412 = vmatprep.subr.mxu0 0.0
  %413 = vmatpush2.msra.mxu0 0.0
  %414 = vmatprep.subr.mxu0 0.0
  %415 = vmatpush2.msra.mxu0 0.0
  %416 = vmatprep.subr.mxu0 0.0
  %417 = vmatpush2.msra.mxu0 0.0
  %418 = vmatprep.subr.mxu0 0.0
  %419 = vmatpush2.msra.mxu0 0.0
  %420 = vmatprep.subr.mxu0 0.0
  %421 = vmatpush2.msra.mxu0 0.0
  %422 = vmatprep.subr.mxu0 0.0
  %423 = vmatpush2.msra.mxu0 0.0
  %424 = vmatprep.mubr.f32.mxu0 0.0
  %425 = vmatmul.mubr.f32.gmra.mxu0 %v355
  %v426 = vpop.f32.mrf.mxu0
  %v427 = vadd.f32 %v351, %v426
  %v428 = vpop.f32.mrf.mxu0
  %429 = vmatprep.mubr.f32.mxu0 0.0
  %430 = vmatmul.mubr.f32.gmra.mxu0 %v358
  %v431 = vpop.f32.mrf.mxu0
  %v432 = vadd.f32 %v351, %v431
  %v433 = vpop.f32.mrf.mxu0
  %434 = vdwg.mxu0
  %v435 = vld [vmem:[%s8] sm:$0xff]
  %v436 = vld [vmem:[%s8 + $0x8] sm:$0xff]
  %v437 = vld [vmem:[%s8 + $0x10] sm:$0xff]
  %v438 = vld [vmem:[%s8 + $0x18] sm:$0xff]
  %v440 = vsel %vm353, %v158, 0
  %442 = vmatprep.subr.mxu0 0.0
  %443 = vmatpush1.msra.mxu0 0.0
  %444 = vmatprep.subr.mxu0 0.0
  %445 = vmatpush1.msra.mxu0 0.0
  %446 = vmatprep.subr.mxu0 0.0
  %447 = vmatpush1.msra.mxu0 0.0
  %448 = vmatprep.subr.mxu0 0.0
  %449 = vmatpush1.msra.mxu0 0.0
  %450 = vmatprep.subr.mxu0 0.0
  %451 = vmatpush1.msra.mxu0 0.0
  %452 = vmatprep.subr.mxu0 0.0
  %453 = vmatpush1.msra.mxu0 0.0
  %454 = vmatprep.subr.mxu0 0.0
  %455 = vmatpush1.msra.mxu0 0.0
  %456 = vmatprep.subr.mxu0 0.0
  %457 = vmatpush1.msra.mxu0 0.0
  %458 = vmatprep.subr.mxu0 0.0
  %459 = vmatpush1.msra.mxu0 0.0
  %460 = vmatprep.subr.mxu0 0.0
  %461 = vmatpush1.msra.mxu0 0.0
  %462 = vmatprep.subr.mxu0 0.0
  %463 = vmatpush1.msra.mxu0 0.0
  %464 = vmatprep.subr.mxu0 0.0
  %465 = vmatpush1.msra.mxu0 0.0
  %466 = vmatprep.subr.mxu0 0.0
  %467 = vmatpush1.msra.mxu0 %v438
  %468 = vmatprep.subr.mxu0 0.0
  %469 = vmatpush1.msra.mxu0 %v437
  %470 = vmatprep.subr.mxu0 0.0
  %471 = vmatpush1.msra.mxu0 %v436
  %472 = vmatprep.subr.mxu0 0.0
  %473 = vmatpush1.msra.mxu0 %v435
  %474 = vmatprep.subr.mxu0 0.0
  %475 = vmatpush2.msra.mxu0 0.0
  %476 = vmatprep.subr.mxu0 0.0
  %477 = vmatpush2.msra.mxu0 0.0
  %478 = vmatprep.subr.mxu0 0.0
  %479 = vmatpush2.msra.mxu0 0.0
  %480 = vmatprep.subr.mxu0 0.0
  %481 = vmatpush2.msra.mxu0 0.0
  %482 = vmatprep.subr.mxu0 0.0
  %483 = vmatpush2.msra.mxu0 0.0
  %484 = vmatprep.subr.mxu0 0.0
  %485 = vmatpush2.msra.mxu0 0.0
  %486 = vmatprep.subr.mxu0 0.0
  %487 = vmatpush2.msra.mxu0 0.0
  %488 = vmatprep.subr.mxu0 0.0
  %489 = vmatpush2.msra.mxu0 0.0
  %490 = vmatprep.subr.mxu0 0.0
  %491 = vmatpush2.msra.mxu0 0.0
  %492 = vmatprep.subr.mxu0 0.0
  %493 = vmatpush2.msra.mxu0 0.0
  %494 = vmatprep.subr.mxu0 0.0
  %495 = vmatpush2.msra.mxu0 0.0
  %496 = vmatprep.subr.mxu0 0.0
  %497 = vmatpush2.msra.mxu0 0.0
  %498 = vmatprep.subr.mxu0 0.0
  %499 = vmatpush2.msra.mxu0 0.0
  %500 = vmatprep.subr.mxu0 0.0
  %501 = vmatpush2.msra.mxu0 0.0
  %502 = vmatprep.subr.mxu0 0.0
  %503 = vmatpush2.msra.mxu0 0.0
  %504 = vmatprep.subr.mxu0 0.0
  %505 = vmatpush2.msra.mxu0 0.0
  %506 = vmatprep.mubr.f32.mxu0 0.0
  %507 = vmatmul.mubr.f32.gmra.mxu0 %v440
  %v508 = vpop.f32.mrf.mxu0
  %v509 = vadd.f32 0.0, %v508
  %v510 = vpop.f32.mrf.mxu0
  %511 = vdwg.mxu0
  %v512 = vadd.f32 %v427, %v509
  %v513 = vxor.u32 %v512, 2147483648
  %v514 = vmul.f32 %v513, 1.442695
  %v515 = vpow.pop %v514
  %v516 = vadd.f32 %v515, 1.0
  %v517 = vrcp.pop %v516
  %v518 = vmul.f32 1.0, %v517
  %v519 = vtanh.pop %v512
  %521 = vrot.lane.b32.xlu0 %v239, 32
  %v522 = vpop.permute.xlu0 %521
  %v524 = vmul.f32 %v518, %v522
  %526 = vrot.lane.b32.xlu0 %v519, 64
  %v527 = vpop.permute.xlu0 %526
  %v529 = vmul.f32 %v518, %v527
  %531 = vrot.lane.b32.xlu0 %v529, 32
  %v532 = vpop.permute.xlu0 %531
  %v534 = vadd.f32 %v524, %v532
  %v535 = vtanh.pop %v534
  %537 = vrot.lane.b32.xlu0 %v535, 64
  %v538 = vpop.permute.xlu0 %537
  %v540 = vmul.f32 %v518, %v538
  %542 = vrot.lane.b32.xlu0 %v540, 32
  %v543 = vpop.permute.xlu0 %542
  %vm545 = vcmask 254976
  %546 = vst.msk [vmem:[#allocation2] sm:$0x3] %vm545, %v543
  %v547 = vsel %vm353, %v543, 0
  %549 = vmatprep.subr.mxu0 0.0
  %550 = vmatpush1.msra.mxu0 0.0
  %551 = vmatprep.subr.mxu0 0.0
  %552 = vmatpush1.msra.mxu0 0.0
  %553 = vmatprep.subr.mxu0 0.0
  %554 = vmatpush1.msra.mxu0 0.0
  %555 = vmatprep.subr.mxu0 0.0
  %556 = vmatpush1.msra.mxu0 0.0
  %557 = vmatprep.subr.mxu0 0.0
  %558 = vmatpush1.msra.mxu0 0.0
  %559 = vmatprep.subr.mxu0 0.0
  %560 = vmatpush1.msra.mxu0 0.0
  %561 = vmatprep.subr.mxu0 0.0
  %562 = vmatpush1.msra.mxu0 0.0
  %563 = vmatprep.subr.mxu0 0.0
  %564 = vmatpush1.msra.mxu0 0.0
  %565 = vmatprep.subr.mxu0 0.0
  %566 = vmatpush1.msra.mxu0 0.0
  %567 = vmatprep.subr.mxu0 0.0
  %568 = vmatpush1.msra.mxu0 0.0
  %569 = vmatprep.subr.mxu0 0.0
  %570 = vmatpush1.msra.mxu0 0.0
  %571 = vmatprep.subr.mxu0 0.0
  %572 = vmatpush1.msra.mxu0 0.0
  %573 = vmatprep.subr.mxu0 0.0
  %574 = vmatpush1.msra.mxu0 %v438
  %575 = vmatprep.subr.mxu0 0.0
  %576 = vmatpush1.msra.mxu0 %v437
  %577 = vmatprep.subr.mxu0 0.0
  %578 = vmatpush1.msra.mxu0 %v436
  %579 = vmatprep.subr.mxu0 0.0
  %580 = vmatpush1.msra.mxu0 %v435
  %581 = vmatprep.subr.mxu0 0.0
  %582 = vmatpush2.msra.mxu0 0.0
  %583 = vmatprep.subr.mxu0 0.0
  %584 = vmatpush2.msra.mxu0 0.0
  %585 = vmatprep.subr.mxu0 0.0
  %586 = vmatpush2.msra.mxu0 0.0
  %587 = vmatprep.subr.mxu0 0.0
  %588 = vmatpush2.msra.mxu0 0.0
  %589 = vmatprep.subr.mxu0 0.0
  %590 = vmatpush2.msra.mxu0 0.0
  %591 = vmatprep.subr.mxu0 0.0
  %592 = vmatpush2.msra.mxu0 0.0
  %593 = vmatprep.subr.mxu0 0.0
  %594 = vmatpush2.msra.mxu0 0.0
  %595 = vmatprep.subr.mxu0 0.0
  %596 = vmatpush2.msra.mxu0 0.0
  %597 = vmatprep.subr.mxu0 0.0
  %598 = vmatpush2.msra.mxu0 0.0
  %599 = vmatprep.subr.mxu0 0.0
  %600 = vmatpush2.msra.mxu0 0.0
  %601 = vmatprep.subr.mxu0 0.0
  %602 = vmatpush2.msra.mxu0 0.0
  %603 = vmatprep.subr.mxu0 0.0
  %604 = vmatpush2.msra.mxu0 0.0
  %605 = vmatprep.subr.mxu0 0.0
  %606 = vmatpush2.msra.mxu0 0.0
  %607 = vmatprep.subr.mxu0 0.0
  %608 = vmatpush2.msra.mxu0 0.0
  %609 = vmatprep.subr.mxu0 0.0
  %610 = vmatpush2.msra.mxu0 0.0
  %611 = vmatprep.subr.mxu0 0.0
  %612 = vmatpush2.msra.mxu0 0.0
  %613 = vmatprep.mubr.f32.mxu0 0.0
  %614 = vmatmul.mubr.f32.gmra.mxu0 %v547
  %v615 = vpop.f32.mrf.mxu0
  %v616 = vadd.f32 0.0, %v615
  %v617 = vpop.f32.mrf.mxu0
  %618 = vdwg.mxu0
  %v620 = vrot.slane %v616, 6
  %v622 = vadd.f32 %v427, %v620
  %v623 = vxor.u32 %v622, 2147483648
  %v624 = vmul.f32 %v623, 1.442695
  %v625 = vpow.pop %v624
  %v626 = vadd.f32 %v625, 1.0
  %v627 = vrcp.pop %v626
  %v628 = vmul.f32 1.0, %v627
  %v629 = vtanh.pop %v622
  %v631 = vrot.slane %v534, 6
  %v633 = vmul.f32 %v628, %v631
  %635 = vrot.lane.b32.xlu0 %v629, 64
  %v636 = vpop.permute.xlu0 %635
  %v638 = vmul.f32 %v628, %v636
  %640 = vrot.lane.b32.xlu0 %v638, 32
  %v641 = vpop.permute.xlu0 %640
  %v643 = vadd.f32 %v633, %v641
  %v644 = vtanh.pop %v643
  %646 = vrot.lane.b32.xlu0 %v644, 64
  %v647 = vpop.permute.xlu0 %646
  %v649 = vmul.f32 %v628, %v647
  %651 = vrot.lane.b32.xlu0 %v649, 32
  %v652 = vpop.permute.xlu0 %651
  %vm654 = vcmask 257026
  %655 = vst.msk [vmem:[#allocation2] sm:$0xc] %vm654, %v652
  %v656 = vrot.slane %v649, 2
  %657 = vrot.lane.b32.xlu0 %v656, 32
  %v658 = vpop.permute.xlu0 %657
  %v659 = vsel %vm353, %v658, 0
  %661 = vmatprep.subr.mxu0 0.0
  %662 = vmatpush1.msra.mxu0 0.0
  %663 = vmatprep.subr.mxu0 0.0
  %664 = vmatpush1.msra.mxu0 0.0
  %665 = vmatprep.subr.mxu0 0.0
  %666 = vmatpush1.msra.mxu0 0.0
  %667 = vmatprep.subr.mxu0 0.0
  %668 = vmatpush1.msra.mxu0 0.0
  %669 = vmatprep.subr.mxu0 0.0
  %670 = vmatpush1.msra.mxu0 0.0
  %671 = vmatprep.subr.mxu0 0.0
  %672 = vmatpush1.msra.mxu0 0.0
  %673 = vmatprep.subr.mxu0 0.0
  %674 = vmatpush1.msra.mxu0 0.0
  %675 = vmatprep.subr.mxu0 0.0
  %676 = vmatpush1.msra.mxu0 0.0
  %677 = vmatprep.subr.mxu0 0.0
  %678 = vmatpush1.msra.mxu0 0.0
  %679 = vmatprep.subr.mxu0 0.0
  %680 = vmatpush1.msra.mxu0 0.0
  %681 = vmatprep.subr.mxu0 0.0
  %682 = vmatpush1.msra.mxu0 0.0
  %683 = vmatprep.subr.mxu0 0.0
  %684 = vmatpush1.msra.mxu0 0.0
  %685 = vmatprep.subr.mxu0 0.0
  %686 = vmatpush1.msra.mxu0 %v438
  %687 = vmatprep.subr.mxu0 0.0
  %688 = vmatpush1.msra.mxu0 %v437
  %689 = vmatprep.subr.mxu0 0.0
  %690 = vmatpush1.msra.mxu0 %v436
  %691 = vmatprep.subr.mxu0 0.0
  %692 = vmatpush1.msra.mxu0 %v435
  %693 = vmatprep.subr.mxu0 0.0
  %694 = vmatpush2.msra.mxu0 0.0
  %695 = vmatprep.subr.mxu0 0.0
  %696 = vmatpush2.msra.mxu0 0.0
  %697 = vmatprep.subr.mxu0 0.0
  %698 = vmatpush2.msra.mxu0 0.0
  %699 = vmatprep.subr.mxu0 0.0
  %700 = vmatpush2.msra.mxu0 0.0
  %701 = vmatprep.subr.mxu0 0.0
  %702 = vmatpush2.msra.mxu0 0.0
  %703 = vmatprep.subr.mxu0 0.0
  %704 = vmatpush2.msra.mxu0 0.0
  %705 = vmatprep.subr.mxu0 0.0
  %706 = vmatpush2.msra.mxu0 0.0
  %707 = vmatprep.subr.mxu0 0.0
  %708 = vmatpush2.msra.mxu0 0.0
  %709 = vmatprep.subr.mxu0 0.0
  %710 = vmatpush2.msra.mxu0 0.0
  %711 = vmatprep.subr.mxu0 0.0
  %712 = vmatpush2.msra.mxu0 0.0
  %713 = vmatprep.subr.mxu0 0.0
  %714 = vmatpush2.msra.mxu0 0.0
  %715 = vmatprep.subr.mxu0 0.0
  %716 = vmatpush2.msra.mxu0 0.0
  %717 = vmatprep.subr.mxu0 0.0
  %718 = vmatpush2.msra.mxu0 0.0
  %719 = vmatprep.subr.mxu0 0.0
  %720 = vmatpush2.msra.mxu0 0.0
  %721 = vmatprep.subr.mxu0 0.0
  %722 = vmatpush2.msra.mxu0 0.0
  %723 = vmatprep.subr.mxu0 0.0
  %724 = vmatpush2.msra.mxu0 0.0
  %725 = vmatprep.mubr.f32.mxu0 0.0
  %726 = vmatmul.mubr.f32.gmra.mxu0 %v659
  %v727 = vpop.f32.mrf.mxu0
  %v728 = vadd.f32 0.0, %v727
  %v729 = vpop.f32.mrf.mxu0
  %730 = vdwg.mxu0
  %v732 = vrot.slane %v728, 4
  %v734 = vadd.f32 %v427, %v732
  %v735 = vxor.u32 %v734, 2147483648
  %v736 = vmul.f32 %v735, 1.442695
  %v737 = vpow.pop %v736
  %v738 = vadd.f32 %v737, 1.0
  %v739 = vrcp.pop %v738
  %v740 = vmul.f32 1.0, %v739
  %v741 = vtanh.pop %v734
  %v743 = vrot.slane %v643, 6
  %v745 = vmul.f32 %v740, %v743
  %747 = vrot.lane.b32.xlu0 %v741, 64
  %v748 = vpop.permute.xlu0 %747
  %v750 = vmul.f32 %v740, %v748
  %752 = vrot.lane.b32.xlu0 %v750, 32
  %v753 = vpop.permute.xlu0 %752
  %v755 = vadd.f32 %v745, %v753
  %v756 = vtanh.pop %v755
  %758 = vrot.lane.b32.xlu0 %v756, 64
  %v759 = vpop.permute.xlu0 %758
  %v761 = vmul.f32 %v740, %v759
  %763 = vrot.lane.b32.xlu0 %v761, 32
  %v764 = vpop.permute.xlu0 %763
  %vm766 = vcmask 259076
  %767 = vst.msk [vmem:[#allocation2] sm:$0x30] %vm766, %v764
  %v768 = vrot.slane %v761, 4
  %769 = vrot.lane.b32.xlu0 %v768, 32
  %v770 = vpop.permute.xlu0 %769
  %v771 = vsel %vm353, %v770, 0
  %773 = vmatprep.subr.mxu0 0.0
  %774 = vmatpush1.msra.mxu0 0.0
  %775 = vmatprep.subr.mxu0 0.0
  %776 = vmatpush1.msra.mxu0 0.0
  %777 = vmatprep.subr.mxu0 0.0
  %778 = vmatpush1.msra.mxu0 0.0
  %779 = vmatprep.subr.mxu0 0.0
  %780 = vmatpush1.msra.mxu0 0.0
  %781 = vmatprep.subr.mxu0 0.0
  %782 = vmatpush1.msra.mxu0 0.0
  %783 = vmatprep.subr.mxu0 0.0
  %784 = vmatpush1.msra.mxu0 0.0
  %785 = vmatprep.subr.mxu0 0.0
  %786 = vmatpush1.msra.mxu0 0.0
  %787 = vmatprep.subr.mxu0 0.0
  %788 = vmatpush1.msra.mxu0 0.0
  %789 = vmatprep.subr.mxu0 0.0
  %790 = vmatpush1.msra.mxu0 0.0
  %791 = vmatprep.subr.mxu0 0.0
  %792 = vmatpush1.msra.mxu0 0.0
  %793 = vmatprep.subr.mxu0 0.0
  %794 = vmatpush1.msra.mxu0 0.0
  %795 = vmatprep.subr.mxu0 0.0
  %796 = vmatpush1.msra.mxu0 0.0
  %797 = vmatprep.subr.mxu0 0.0
  %798 = vmatpush1.msra.mxu0 %v438
  %799 = vmatprep.subr.mxu0 0.0
  %800 = vmatpush1.msra.mxu0 %v437
  %801 = vmatprep.subr.mxu0 0.0
  %802 = vmatpush1.msra.mxu0 %v436
  %803 = vmatprep.subr.mxu0 0.0
  %804 = vmatpush1.msra.mxu0 %v435
  %805 = vmatprep.subr.mxu0 0.0
  %806 = vmatpush2.msra.mxu0 0.0
  %807 = vmatprep.subr.mxu0 0.0
  %808 = vmatpush2.msra.mxu0 0.0
  %809 = vmatprep.subr.mxu0 0.0
  %810 = vmatpush2.msra.mxu0 0.0
  %811 = vmatprep.subr.mxu0 0.0
  %812 = vmatpush2.msra.mxu0 0.0
  %813 = vmatprep.subr.mxu0 0.0
  %814 = vmatpush2.msra.mxu0 0.0
  %815 = vmatprep.subr.mxu0 0.0
  %816 = vmatpush2.msra.mxu0 0.0
  %817 = vmatprep.subr.mxu0 0.0
  %818 = vmatpush2.msra.mxu0 0.0
  %819 = vmatprep.subr.mxu0 0.0
  %820 = vmatpush2.msra.mxu0 0.0
  %821 = vmatprep.subr.mxu0 0.0
  %822 = vmatpush2.msra.mxu0 0.0
  %823 = vmatprep.subr.mxu0 0.0
  %824 = vmatpush2.msra.mxu0 0.0
  %825 = vmatprep.subr.mxu0 0.0
  %826 = vmatpush2.msra.mxu0 0.0
  %827 = vmatprep.subr.mxu0 0.0
  %828 = vmatpush2.msra.mxu0 0.0
  %829 = vmatprep.subr.mxu0 0.0
  %830 = vmatpush2.msra.mxu0 0.0
  %831 = vmatprep.subr.mxu0 0.0
  %832 = vmatpush2.msra.mxu0 0.0
  %833 = vmatprep.subr.mxu0 0.0
  %834 = vmatpush2.msra.mxu0 0.0
  %835 = vmatprep.subr.mxu0 0.0
  %836 = vmatpush2.msra.mxu0 0.0
  %837 = vmatprep.mubr.f32.mxu0 0.0
  %838 = vmatmul.mubr.f32.gmra.mxu0 %v771
  %v839 = vpop.f32.mrf.mxu0
  %v840 = vadd.f32 0.0, %v839
  %v841 = vpop.f32.mrf.mxu0
  %842 = vdwg.mxu0
  %v844 = vrot.slane %v840, 2
  %v846 = vadd.f32 %v427, %v844
  %v847 = vxor.u32 %v846, 2147483648
  %v848 = vmul.f32 %v847, 1.442695
  %v849 = vpow.pop %v848
  %v850 = vadd.f32 %v849, 1.0
  %v851 = vrcp.pop %v850
  %v852 = vmul.f32 1.0, %v851
  %v853 = vtanh.pop %v846
  %v855 = vrot.slane %v755, 6
  %v857 = vmul.f32 %v852, %v855
  %859 = vrot.lane.b32.xlu0 %v853, 64
  %v860 = vpop.permute.xlu0 %859
  %v862 = vmul.f32 %v852, %v860
  %864 = vrot.lane.b32.xlu0 %v862, 32
  %v865 = vpop.permute.xlu0 %864
  %v867 = vadd.f32 %v857, %v865
  %v868 = vtanh.pop %v867
  %870 = vrot.lane.b32.xlu0 %v868, 64
  %v871 = vpop.permute.xlu0 %870
  %v873 = vmul.f32 %v852, %v871
  %875 = vrot.lane.b32.xlu0 %v873, 32
  %v876 = vpop.permute.xlu0 %875
  %vm878 = vcmask 261126
  %879 = vst.msk [vmem:[#allocation2] sm:$0xc0] %vm878, %v876
  %v880 = vrot.slane %v873, 6
  %881 = vrot.lane.b32.xlu0 %v880, 32
  %v882 = vpop.permute.xlu0 %881
  %v883 = vsel %vm353, %v882, 0
  %885 = vmatprep.subr.mxu0 0.0
  %886 = vmatpush1.msra.mxu0 0.0
  %887 = vmatprep.subr.mxu0 0.0
  %888 = vmatpush1.msra.mxu0 0.0
  %889 = vmatprep.subr.mxu0 0.0
  %890 = vmatpush1.msra.mxu0 0.0
  %891 = vmatprep.subr.mxu0 0.0
  %892 = vmatpush1.msra.mxu0 0.0
  %893 = vmatprep.subr.mxu0 0.0
  %894 = vmatpush1.msra.mxu0 0.0
  %895 = vmatprep.subr.mxu0 0.0
  %896 = vmatpush1.msra.mxu0 0.0
  %897 = vmatprep.subr.mxu0 0.0
  %898 = vmatpush1.msra.mxu0 0.0
  %899 = vmatprep.subr.mxu0 0.0
  %900 = vmatpush1.msra.mxu0 0.0
  %901 = vmatprep.subr.mxu0 0.0
  %902 = vmatpush1.msra.mxu0 0.0
  %903 = vmatprep.subr.mxu0 0.0
  %904 = vmatpush1.msra.mxu0 0.0
  %905 = vmatprep.subr.mxu0 0.0
  %906 = vmatpush1.msra.mxu0 0.0
  %907 = vmatprep.subr.mxu0 0.0
  %908 = vmatpush1.msra.mxu0 0.0
  %909 = vmatprep.subr.mxu0 0.0
  %910 = vmatpush1.msra.mxu0 %v438
  %911 = vmatprep.subr.mxu0 0.0
  %912 = vmatpush1.msra.mxu0 %v437
  %913 = vmatprep.subr.mxu0 0.0
  %914 = vmatpush1.msra.mxu0 %v436
  %915 = vmatprep.subr.mxu0 0.0
  %916 = vmatpush1.msra.mxu0 %v435
  %917 = vmatprep.subr.mxu0 0.0
  %918 = vmatpush2.msra.mxu0 0.0
  %919 = vmatprep.subr.mxu0 0.0
  %920 = vmatpush2.msra.mxu0 0.0
  %921 = vmatprep.subr.mxu0 0.0
  %922 = vmatpush2.msra.mxu0 0.0
  %923 = vmatprep.subr.mxu0 0.0
  %924 = vmatpush2.msra.mxu0 0.0
  %925 = vmatprep.subr.mxu0 0.0
  %926 = vmatpush2.msra.mxu0 0.0
  %927 = vmatprep.subr.mxu0 0.0
  %928 = vmatpush2.msra.mxu0 0.0
  %929 = vmatprep.subr.mxu0 0.0
  %930 = vmatpush2.msra.mxu0 0.0
  %931 = vmatprep.subr.mxu0 0.0
  %932 = vmatpush2.msra.mxu0 0.0
  %933 = vmatprep.subr.mxu0 0.0
  %934 = vmatpush2.msra.mxu0 0.0
  %935 = vmatprep.subr.mxu0 0.0
  %936 = vmatpush2.msra.mxu0 0.0
  %937 = vmatprep.subr.mxu0 0.0
  %938 = vmatpush2.msra.mxu0 0.0
  %939 = vmatprep.subr.mxu0 0.0
  %940 = vmatpush2.msra.mxu0 0.0
  %941 = vmatprep.subr.mxu0 0.0
  %942 = vmatpush2.msra.mxu0 0.0
  %943 = vmatprep.subr.mxu0 0.0
  %944 = vmatpush2.msra.mxu0 0.0
  %945 = vmatprep.subr.mxu0 0.0
  %946 = vmatpush2.msra.mxu0 0.0
  %947 = vmatprep.subr.mxu0 0.0
  %948 = vmatpush2.msra.mxu0 0.0
  %949 = vmatprep.mubr.f32.mxu0 0.0
  %950 = vmatmul.mubr.f32.gmra.mxu0 %v883
  %v951 = vpop.f32.mrf.mxu0
  %v952 = vadd.f32 0.0, %v951
  %v953 = vpop.f32.mrf.mxu0
  %954 = vdwg.mxu0
  %v955 = vadd.f32 %v432, %v952
  %v956 = vxor.u32 %v955, 2147483648
  %v957 = vmul.f32 %v956, 1.442695
  %v958 = vpow.pop %v957
  %v959 = vadd.f32 %v958, 1.0
  %v960 = vrcp.pop %v959
  %v961 = vmul.f32 1.0, %v960
  %v962 = vtanh.pop %v955
  %v964 = vrot.slane %v867, 6
  %v966 = vmul.f32 %v961, %v964
  %968 = vrot.lane.b32.xlu0 %v962, 64
  %v969 = vpop.permute.xlu0 %968
  %v971 = vmul.f32 %v961, %v969
  %973 = vrot.lane.b32.xlu0 %v971, 32
  %v974 = vpop.permute.xlu0 %973
  %v976 = vadd.f32 %v966, %v974
  %v977 = vtanh.pop %v976
  %979 = vrot.lane.b32.xlu0 %v977, 64
  %v980 = vpop.permute.xlu0 %979
  %v982 = vmul.f32 %v961, %v980
  %984 = vrot.lane.b32.xlu0 %v982, 32
  %v985 = vpop.permute.xlu0 %984
  %987 = vst.msk [vmem:[#allocation2 + $0x8] sm:$0x3] %vm545, %v985
  %v988 = vsel %vm353, %v985, 0
  %990 = vmatprep.subr.mxu0 0.0
  %991 = vmatpush1.msra.mxu0 0.0
  %992 = vmatprep.subr.mxu0 0.0
  %993 = vmatpush1.msra.mxu0 0.0
  %994 = vmatprep.subr.mxu0 0.0
  %995 = vmatpush1.msra.mxu0 0.0
  %996 = vmatprep.subr.mxu0 0.0
  %997 = vmatpush1.msra.mxu0 0.0
  %998 = vmatprep.subr.mxu0 0.0
  %999 = vmatpush1.msra.mxu0 0.0
  %1000 = vmatprep.subr.mxu0 0.0
  %1001 = vmatpush1.msra.mxu0 0.0
  %1002 = vmatprep.subr.mxu0 0.0
  %1003 = vmatpush1.msra.mxu0 0.0
  %1004 = vmatprep.subr.mxu0 0.0
  %1005 = vmatpush1.msra.mxu0 0.0
  %1006 = vmatprep.subr.mxu0 0.0
  %1007 = vmatpush1.msra.mxu0 0.0
  %1008 = vmatprep.subr.mxu0 0.0
  %1009 = vmatpush1.msra.mxu0 0.0
  %1010 = vmatprep.subr.mxu0 0.0
  %1011 = vmatpush1.msra.mxu0 0.0
  %1012 = vmatprep.subr.mxu0 0.0
  %1013 = vmatpush1.msra.mxu0 0.0
  %1014 = vmatprep.subr.mxu0 0.0
  %1015 = vmatpush1.msra.mxu0 %v438
  %1016 = vmatprep.subr.mxu0 0.0
  %1017 = vmatpush1.msra.mxu0 %v437
  %1018 = vmatprep.subr.mxu0 0.0
  %1019 = vmatpush1.msra.mxu0 %v436
  %1020 = vmatprep.subr.mxu0 0.0
  %1021 = vmatpush1.msra.mxu0 %v435
  %1022 = vmatprep.subr.mxu0 0.0
  %1023 = vmatpush2.msra.mxu0 0.0
  %1024 = vmatprep.subr.mxu0 0.0
  %1025 = vmatpush2.msra.mxu0 0.0
  %1026 = vmatprep.subr.mxu0 0.0
  %1027 = vmatpush2.msra.mxu0 0.0
  %1028 = vmatprep.subr.mxu0 0.0
  %1029 = vmatpush2.msra.mxu0 0.0
  %1030 = vmatprep.subr.mxu0 0.0
  %1031 = vmatpush2.msra.mxu0 0.0
  %1032 = vmatprep.subr.mxu0 0.0
  %1033 = vmatpush2.msra.mxu0 0.0
  %1034 = vmatprep.subr.mxu0 0.0
  %1035 = vmatpush2.msra.mxu0 0.0
  %1036 = vmatprep.subr.mxu0 0.0
  %1037 = vmatpush2.msra.mxu0 0.0
  %1038 = vmatprep.subr.mxu0 0.0
  %1039 = vmatpush2.msra.mxu0 0.0
  %1040 = vmatprep.subr.mxu0 0.0
  %1041 = vmatpush2.msra.mxu0 0.0
  %1042 = vmatprep.subr.mxu0 0.0
  %1043 = vmatpush2.msra.mxu0 0.0
  %1044 = vmatprep.subr.mxu0 0.0
  %1045 = vmatpush2.msra.mxu0 0.0
  %1046 = vmatprep.subr.mxu0 0.0
  %1047 = vmatpush2.msra.mxu0 0.0
  %1048 = vmatprep.subr.mxu0 0.0
  %1049 = vmatpush2.msra.mxu0 0.0
  %1050 = vmatprep.subr.mxu0 0.0
  %1051 = vmatpush2.msra.mxu0 0.0
  %1052 = vmatprep.subr.mxu0 0.0
  %1053 = vmatpush2.msra.mxu0 0.0
  %1054 = vmatprep.mubr.f32.mxu0 0.0
  %1055 = vmatmul.mubr.f32.gmra.mxu0 %v988
  %v1056 = vpop.f32.mrf.mxu0
  %v1057 = vadd.f32 0.0, %v1056
  %v1058 = vpop.f32.mrf.mxu0
  %1059 = vdwg.mxu0
  %v1061 = vrot.slane %v1057, 6
  %v1063 = vadd.f32 %v432, %v1061
  %v1064 = vxor.u32 %v1063, 2147483648
  %v1065 = vmul.f32 %v1064, 1.442695
  %v1066 = vpow.pop %v1065
  %v1067 = vadd.f32 %v1066, 1.0
  %v1068 = vrcp.pop %v1067
  %v1069 = vmul.f32 1.0, %v1068
  %v1070 = vtanh.pop %v1063
  %v1072 = vrot.slane %v976, 6
  %v1074 = vmul.f32 %v1069, %v1072
  %1076 = vrot.lane.b32.xlu0 %v1070, 64
  %v1077 = vpop.permute.xlu0 %1076
  %v1079 = vmul.f32 %v1069, %v1077
  %1081 = vrot.lane.b32.xlu0 %v1079, 32
  %v1082 = vpop.permute.xlu0 %1081
  %v1084 = vadd.f32 %v1074, %v1082
  %v1085 = vtanh.pop %v1084
  %1087 = vrot.lane.b32.xlu0 %v1085, 64
  %v1088 = vpop.permute.xlu0 %1087
  %v1090 = vmul.f32 %v1069, %v1088
  %1092 = vrot.lane.b32.xlu0 %v1090, 32
  %v1093 = vpop.permute.xlu0 %1092
  %1095 = vst.msk [vmem:[#allocation2 + $0x8] sm:$0xc] %vm654, %v1093
  %v1096 = vrot.slane %v1090, 2
  %1097 = vrot.lane.b32.xlu0 %v1096, 32
  %v1098 = vpop.permute.xlu0 %1097
  %v1099 = vsel %vm353, %v1098, 0
  %1101 = vmatprep.subr.mxu0 0.0
  %1102 = vmatpush1.msra.mxu0 0.0
  %1103 = vmatprep.subr.mxu0 0.0
  %1104 = vmatpush1.msra.mxu0 0.0
  %1105 = vmatprep.subr.mxu0 0.0
  %1106 = vmatpush1.msra.mxu0 0.0
  %1107 = vmatprep.subr.mxu0 0.0
  %1108 = vmatpush1.msra.mxu0 0.0
  %1109 = vmatprep.subr.mxu0 0.0
  %1110 = vmatpush1.msra.mxu0 0.0
  %1111 = vmatprep.subr.mxu0 0.0
  %1112 = vmatpush1.msra.mxu0 0.0
  %1113 = vmatprep.subr.mxu0 0.0
  %1114 = vmatpush1.msra.mxu0 0.0
  %1115 = vmatprep.subr.mxu0 0.0
  %1116 = vmatpush1.msra.mxu0 0.0
  %1117 = vmatprep.subr.mxu0 0.0
  %1118 = vmatpush1.msra.mxu0 0.0
  %1119 = vmatprep.subr.mxu0 0.0
  %1120 = vmatpush1.msra.mxu0 0.0
  %1121 = vmatprep.subr.mxu0 0.0
  %1122 = vmatpush1.msra.mxu0 0.0
  %1123 = vmatprep.subr.mxu0 0.0
  %1124 = vmatpush1.msra.mxu0 0.0
  %1125 = vmatprep.subr.mxu0 0.0
  %1126 = vmatpush1.msra.mxu0 %v438
  %1127 = vmatprep.subr.mxu0 0.0
  %1128 = vmatpush1.msra.mxu0 %v437
  %1129 = vmatprep.subr.mxu0 0.0
  %1130 = vmatpush1.msra.mxu0 %v436
  %1131 = vmatprep.subr.mxu0 0.0
  %1132 = vmatpush1.msra.mxu0 %v435
  %1133 = vmatprep.subr.mxu0 0.0
  %1134 = vmatpush2.msra.mxu0 0.0
  %1135 = vmatprep.subr.mxu0 0.0
  %1136 = vmatpush2.msra.mxu0 0.0
  %1137 = vmatprep.subr.mxu0 0.0
  %1138 = vmatpush2.msra.mxu0 0.0
  %1139 = vmatprep.subr.mxu0 0.0
  %1140 = vmatpush2.msra.mxu0 0.0
  %1141 = vmatprep.subr.mxu0 0.0
  %1142 = vmatpush2.msra.mxu0 0.0
  %1143 = vmatprep.subr.mxu0 0.0
  %1144 = vmatpush2.msra.mxu0 0.0
  %1145 = vmatprep.subr.mxu0 0.0
  %1146 = vmatpush2.msra.mxu0 0.0
  %1147 = vmatprep.subr.mxu0 0.0
  %1148 = vmatpush2.msra.mxu0 0.0
  %1149 = vmatprep.subr.mxu0 0.0
  %1150 = vmatpush2.msra.mxu0 0.0
  %1151 = vmatprep.subr.mxu0 0.0
  %1152 = vmatpush2.msra.mxu0 0.0
  %1153 = vmatprep.subr.mxu0 0.0
  %1154 = vmatpush2.msra.mxu0 0.0
  %1155 = vmatprep.subr.mxu0 0.0
  %1156 = vmatpush2.msra.mxu0 0.0
  %1157 = vmatprep.subr.mxu0 0.0
  %1158 = vmatpush2.msra.mxu0 0.0
  %1159 = vmatprep.subr.mxu0 0.0
  %1160 = vmatpush2.msra.mxu0 0.0
  %1161 = vmatprep.subr.mxu0 0.0
  %1162 = vmatpush2.msra.mxu0 0.0
  %1163 = vmatprep.subr.mxu0 0.0
  %1164 = vmatpush2.msra.mxu0 0.0
  %1165 = vmatprep.mubr.f32.mxu0 0.0
  %1166 = vmatmul.mubr.f32.gmra.mxu0 %v1099
  %v1167 = vpop.f32.mrf.mxu0
  %v1168 = vadd.f32 0.0, %v1167
  %v1169 = vpop.f32.mrf.mxu0
  %1170 = vdwg.mxu0
  %v1172 = vrot.slane %v1168, 4
  %v1174 = vadd.f32 %v432, %v1172
  %v1175 = vxor.u32 %v1174, 2147483648
  %v1176 = vmul.f32 %v1175, 1.442695
  %v1177 = vpow.pop %v1176
  %v1178 = vadd.f32 %v1177, 1.0
  %v1179 = vrcp.pop %v1178
  %v1180 = vmul.f32 1.0, %v1179
  %v1181 = vtanh.pop %v1174
  %v1183 = vrot.slane %v1084, 6
  %v1185 = vmul.f32 %v1180, %v1183
  %1187 = vrot.lane.b32.xlu0 %v1181, 64
  %v1188 = vpop.permute.xlu0 %1187
  %v1190 = vmul.f32 %v1180, %v1188
  %1192 = vrot.lane.b32.xlu0 %v1190, 32
  %v1193 = vpop.permute.xlu0 %1192
  %v1195 = vadd.f32 %v1185, %v1193
  %v1196 = vtanh.pop %v1195
  %1198 = vrot.lane.b32.xlu0 %v1196, 64
  %v1199 = vpop.permute.xlu0 %1198
  %v1201 = vmul.f32 %v1180, %v1199
  %1203 = vrot.lane.b32.xlu0 %v1201, 32
  %v1204 = vpop.permute.xlu0 %1203
  %1206 = vst.msk [vmem:[#allocation2 + $0x8] sm:$0x30] %vm766, %v1204
  %v1207 = vrot.slane %v1201, 4
  %1208 = vrot.lane.b32.xlu0 %v1207, 32
  %v1209 = vpop.permute.xlu0 %1208
  %v1210 = vsel %vm353, %v1209, 0
  %1212 = vmatprep.subr.mxu0 0.0
  %1213 = vmatpush1.msra.mxu0 0.0
  %1214 = vmatprep.subr.mxu0 0.0
  %1215 = vmatpush1.msra.mxu0 0.0
  %1216 = vmatprep.subr.mxu0 0.0
  %1217 = vmatpush1.msra.mxu0 0.0
  %1218 = vmatprep.subr.mxu0 0.0
  %1219 = vmatpush1.msra.mxu0 0.0
  %1220 = vmatprep.subr.mxu0 0.0
  %1221 = vmatpush1.msra.mxu0 0.0
  %1222 = vmatprep.subr.mxu0 0.0
  %1223 = vmatpush1.msra.mxu0 0.0
  %1224 = vmatprep.subr.mxu0 0.0
  %1225 = vmatpush1.msra.mxu0 0.0
  %1226 = vmatprep.subr.mxu0 0.0
  %1227 = vmatpush1.msra.mxu0 0.0
  %1228 = vmatprep.subr.mxu0 0.0
  %1229 = vmatpush1.msra.mxu0 0.0
  %1230 = vmatprep.subr.mxu0 0.0
  %1231 = vmatpush1.msra.mxu0 0.0
  %1232 = vmatprep.subr.mxu0 0.0
  %1233 = vmatpush1.msra.mxu0 0.0
  %1234 = vmatprep.subr.mxu0 0.0
  %1235 = vmatpush1.msra.mxu0 0.0
  %1236 = vmatprep.subr.mxu0 0.0
  %1237 = vmatpush1.msra.mxu0 %v438
  %1238 = vmatprep.subr.mxu0 0.0
  %1239 = vmatpush1.msra.mxu0 %v437
  %1240 = vmatprep.subr.mxu0 0.0
  %1241 = vmatpush1.msra.mxu0 %v436
  %1242 = vmatprep.subr.mxu0 0.0
  %1243 = vmatpush1.msra.mxu0 %v435
  %1244 = vmatprep.subr.mxu0 0.0
  %1245 = vmatpush2.msra.mxu0 0.0
  %1246 = vmatprep.subr.mxu0 0.0
  %1247 = vmatpush2.msra.mxu0 0.0
  %1248 = vmatprep.subr.mxu0 0.0
  %1249 = vmatpush2.msra.mxu0 0.0
  %1250 = vmatprep.subr.mxu0 0.0
  %1251 = vmatpush2.msra.mxu0 0.0
  %1252 = vmatprep.subr.mxu0 0.0
  %1253 = vmatpush2.msra.mxu0 0.0
  %1254 = vmatprep.subr.mxu0 0.0
  %1255 = vmatpush2.msra.mxu0 0.0
  %1256 = vmatprep.subr.mxu0 0.0
  %1257 = vmatpush2.msra.mxu0 0.0
  %1258 = vmatprep.subr.mxu0 0.0
  %1259 = vmatpush2.msra.mxu0 0.0
  %1260 = vmatprep.subr.mxu0 0.0
  %1261 = vmatpush2.msra.mxu0 0.0
  %1262 = vmatprep.subr.mxu0 0.0
  %1263 = vmatpush2.msra.mxu0 0.0
  %1264 = vmatprep.subr.mxu0 0.0
  %1265 = vmatpush2.msra.mxu0 0.0
  %1266 = vmatprep.subr.mxu0 0.0
  %1267 = vmatpush2.msra.mxu0 0.0
  %1268 = vmatprep.subr.mxu0 0.0
  %1269 = vmatpush2.msra.mxu0 0.0
  %1270 = vmatprep.subr.mxu0 0.0
  %1271 = vmatpush2.msra.mxu0 0.0
  %1272 = vmatprep.subr.mxu0 0.0
  %1273 = vmatpush2.msra.mxu0 0.0
  %1274 = vmatprep.subr.mxu0 0.0
  %1275 = vmatpush2.msra.mxu0 0.0
  %1276 = vmatprep.mubr.f32.mxu0 0.0
  %1277 = vmatmul.mubr.f32.gmra.mxu0 %v1210
  %v1278 = vpop.f32.mrf.mxu0
  %v1279 = vadd.f32 0.0, %v1278
  %v1280 = vpop.f32.mrf.mxu0
  %1281 = vdwg.mxu0
  %v1283 = vrot.slane %v1279, 2
  %v1285 = vadd.f32 %v432, %v1283
  %v1286 = vxor.u32 %v1285, 2147483648
  %v1287 = vmul.f32 %v1286, 1.442695
  %v1288 = vpow.pop %v1287
  %v1289 = vadd.f32 %v1288, 1.0
  %v1290 = vrcp.pop %v1289
  %v1291 = vmul.f32 1.0, %v1290
  %v1292 = vtanh.pop %v1285
  %v1294 = vrot.slane %v1195, 6
  %v1296 = vmul.f32 %v1291, %v1294
  %1298 = vrot.lane.b32.xlu0 %v1292, 64
  %v1299 = vpop.permute.xlu0 %1298
  %v1301 = vmul.f32 %v1291, %v1299
  %1303 = vrot.lane.b32.xlu0 %v1301, 32
  %v1304 = vpop.permute.xlu0 %1303
  %v1306 = vadd.f32 %v1296, %v1304
  %v1307 = vtanh.pop %v1306
  %1309 = vrot.lane.b32.xlu0 %v1307, 64
  %v1310 = vpop.permute.xlu0 %1309
  %v1312 = vmul.f32 %v1291, %v1310
  %1314 = vrot.lane.b32.xlu0 %v1312, 32
  %v1315 = vpop.permute.xlu0 %1314
  %1317 = vst.msk [vmem:[#allocation2 + $0x8] sm:$0xc0] %vm878, %v1315
  %v1318 = vld [vmem:[#allocation2] sm:$0xff]
  %v1319 = vld [vmem:[#allocation2 + $0x8] sm:$0xff]
  %v1320 = vld [vmem:[%s10] sm:$0xff]
  %v1321 = vld [vmem:[%s10 + $0x8] sm:$0xff]
  %v1322 = vld [vmem:[%s10 + $0x10] sm:$0xff]
  %v1323 = vld [vmem:[%s10 + $0x18] sm:$0xff]
  %v1324 = vld [vmem:[%s11] sm:$0x1]
  %v1326 = vlaneseq
  %v1327 = vshrl.u32 %v1326, 7
  %v1328 = vsub.s32 0, %v1327
  %v1329 = vrot.slane %v1324, %v1328
  %v1332 = vsel %vm353, %v1318, 0
  %v1335 = vsel %vm353, %v1319, 0
  %1337 = vmatprep.subr.mxu0 0.0
  %1338 = vmatpush1.msra.mxu0 0.0
  %1339 = vmatprep.subr.mxu0 0.0
  %1340 = vmatpush1.msra.mxu0 0.0
  %1341 = vmatprep.subr.mxu0 0.0
  %1342 = vmatpush1.msra.mxu0 0.0
  %1343 = vmatprep.subr.mxu0 0.0
  %1344 = vmatpush1.msra.mxu0 0.0
  %1345 = vmatprep.subr.mxu0 0.0
  %1346 = vmatpush1.msra.mxu0 0.0
  %1347 = vmatprep.subr.mxu0 0.0
  %1348 = vmatpush1.msra.mxu0 0.0
  %1349 = vmatprep.subr.mxu0 0.0
  %1350 = vmatpush1.msra.mxu0 0.0
  %1351 = vmatprep.subr.mxu0 0.0
  %1352 = vmatpush1.msra.mxu0 0.0
  %1353 = vmatprep.subr.mxu0 0.0
  %1354 = vmatpush1.msra.mxu0 0.0
  %1355 = vmatprep.subr.mxu0 0.0
  %1356 = vmatpush1.msra.mxu0 0.0
  %1357 = vmatprep.subr.mxu0 0.0
  %1358 = vmatpush1.msra.mxu0 0.0
  %1359 = vmatprep.subr.mxu0 0.0
  %1360 = vmatpush1.msra.mxu0 0.0
  %1361 = vmatprep.subr.mxu0 0.0
  %1362 = vmatpush1.msra.mxu0 %v1323
  %1363 = vmatprep.subr.mxu0 0.0
  %1364 = vmatpush1.msra.mxu0 %v1322
  %1365 = vmatprep.subr.mxu0 0.0
  %1366 = vmatpush1.msra.mxu0 %v1321
  %1367 = vmatprep.subr.mxu0 0.0
  %1368 = vmatpush1.msra.mxu0 %v1320
  %1369 = vmatprep.subr.mxu0 0.0
  %1370 = vmatpush2.msra.mxu0 0.0
  %1371 = vmatprep.subr.mxu0 0.0
  %1372 = vmatpush2.msra.mxu0 0.0
  %1373 = vmatprep.subr.mxu0 0.0
  %1374 = vmatpush2.msra.mxu0 0.0
  %1375 = vmatprep.subr.mxu0 0.0
  %1376 = vmatpush2.msra.mxu0 0.0
  %1377 = vmatprep.subr.mxu0 0.0
  %1378 = vmatpush2.msra.mxu0 0.0
  %1379 = vmatprep.subr.mxu0 0.0
  %1380 = vmatpush2.msra.mxu0 0.0
  %1381 = vmatprep.subr.mxu0 0.0
  %1382 = vmatpush2.msra.mxu0 0.0
  %1383 = vmatprep.subr.mxu0 0.0
  %1384 = vmatpush2.msra.mxu0 0.0
  %1385 = vmatprep.subr.mxu0 0.0
  %1386 = vmatpush2.msra.mxu0 0.0
  %1387 = vmatprep.subr.mxu0 0.0
  %1388 = vmatpush2.msra.mxu0 0.0
  %1389 = vmatprep.subr.mxu0 0.0
  %1390 = vmatpush2.msra.mxu0 0.0
  %1391 = vmatprep.subr.mxu0 0.0
  %1392 = vmatpush2.msra.mxu0 0.0
  %1393 = vmatprep.subr.mxu0 0.0
  %1394 = vmatpush2.msra.mxu0 0.0
  %1395 = vmatprep.subr.mxu0 0.0
  %1396 = vmatpush2.msra.mxu0 0.0
  %1397 = vmatprep.subr.mxu0 0.0
  %1398 = vmatpush2.msra.mxu0 0.0
  %1399 = vmatprep.subr.mxu0 0.0
  %1400 = vmatpush2.msra.mxu0 0.0
  %1401 = vmatprep.mubr.f32.mxu0 0.0
  %1402 = vmatmul.mubr.f32.gmra.mxu0 %v1332
  %v1403 = vpop.f32.mrf.mxu0
  %v1404 = vadd.f32 %v1329, %v1403
  %v1405 = vpop.f32.mrf.mxu0
  %1406 = vmatprep.mubr.f32.mxu0 0.0
  %1407 = vmatmul.mubr.f32.gmra.mxu0 %v1335
  %v1408 = vpop.f32.mrf.mxu0
  %v1409 = vadd.f32 %v1329, %v1408
  %v1410 = vpop.f32.mrf.mxu0
  %1411 = vdwg.mxu0
  %1412 = vst.msk [vmem:[%s12] sm:$0xff] %vm260, %v1404
  %1413 = vst.msk [vmem:[%s12 + $0x8] sm:$0xff] %vm260, %v1409
  // Predicated region
  $region50: #{captioner_forward.1} parent=0 // pred_check
    _
  $region51: #{captioner_forward.1} parent=0 // pred_check_branch
    %1415 = sbr.rel (0) target = $region53
  $region52: #{captioner_forward.1} parent=0 // pred_region
    _
  $region53: #{captioner_forward.1} parent=0 // pred_fallthru
    _
  // Predicated region
  $region54: #{captioner_forward.1} parent=0 // pred_check
    _
  $region55: #{captioner_forward.1} parent=0 // pred_check_branch
    %1417 = sbr.rel (0) target = $region57
  $region56: #{captioner_forward.1} parent=0 // pred_region
    _
  $region57: #{captioner_forward.1} parent=0 // pred_fallthru
    _

</llo_original>
